<compile_context>
chip_gen: v5e
topology: v5e:2x2
jax: 0.10.0
libtpu: 0.0.40
codegen_flags: <defaults>
</compile_context>

<pallas_src>
import functools

import numpy as np
import jax
import jax.numpy as jnp
from jax.experimental import pallas as pl
from jax.experimental.pallas import tpu as pltpu


# ----------------------------------------------------------------------------
# Pallas kernel: one (batch, out-channel-block) grid cell of an FPNLayer
# ----------------------------------------------------------------------------
def fpn_layer_kernel(x_ref, w1_ref, b1_ref, ref_ref, w2_ref, b2_ref,
                     mh_ref, mw_ref, o_ref, *, hx, wx, hr, wr):
    # x_ref   : (1, Hx, Wx, Cin_p)   bf16   top-down (coarse) input
    # w1_ref  : (Cin_p, Cb)          bf16   conv1 weight (BN scale folded in)
    # b1_ref  : (1, Cb)              f32    conv1 bias   (BN folded in)
    # ref_ref : (1, Hr, Wr, Cout_p)  bf16   lateral input
    # w2_ref  : (Cout_p, Cb)         bf16   conv2 weight (BN folded in)
    # b2_ref  : (1, Cb)              f32
    # mh_ref  : (Hr, Hx)             bf16   1-D bilinear weights along H
    # mw_ref  : (Wr, Wx)             bf16   1-D bilinear weights along W
    # o_ref   : (1, Hr, Wr, Cb)      f32
    cb = o_ref.shape[-1]

    # ---- top-down branch: 1x1 conv (BN folded) + ReLU ----------------------
    x = x_ref[0].reshape(hx * wx, x_ref.shape[-1])              # (Hx*Wx, Cin)
    y1 = jnp.dot(x, w1_ref[...], preferred_element_type=jnp.float32)
    y1 = jnp.maximum(y1 + b1_ref[...], 0.0)                     # f32
    y1 = y1.astype(jnp.bfloat16).reshape(hx, wx, cb)            # (Hx, Wx, Cb)

    # ---- separable bilinear resize; channels stay in lanes -----------------
    # W resize: batched over the Hx rows -> (Hx, Wr, Cb)
    mw_b = jnp.broadcast_to(mw_ref[...][None, :, :], (hx, wr, wx))
    a = jnp.einsum('hsw,hwc->hsc', mw_b, y1,
                   preferred_element_type=jnp.float32)
    a = a.astype(jnp.bfloat16).reshape(hx, wr * cb)
    # H resize: one 2-D matmul -> (Hr, Wr*Cb)
    up = jnp.dot(mh_ref[...], a, preferred_element_type=jnp.float32)
    up = up.reshape(hr, wr, cb)

    # ---- lateral branch: 1x1 conv (BN folded) + ReLU ------------------------
    r = ref_ref[0].reshape(hr * wr, ref_ref.shape[-1])           # (Hr*Wr, Cout)
    y2 = jnp.dot(r, w2_ref[...], preferred_element_type=jnp.float32)
    y2 = jnp.maximum(y2 + b2_ref[...], 0.0).reshape(hr, wr, cb)

    o_ref[0] = (up + y2).astype(o_ref.dtype)


# ----------------------------------------------------------------------------
# Host-side glue
# ----------------------------------------------------------------------------
def _round_up(v, m):
    return (v + m - 1) // m * m


def pt_bilinear_matrix(out_size, in_size):
    """PyTorch F.interpolate(mode='bilinear', align_corners=False), 1-D taps."""
    m = np.zeros((out_size, in_size), np.float32)
    scale = in_size / out_size
    for i in range(out_size):
        src = max((i + 0.5) * scale - 0.5, 0.0)
        i0 = min(int(np.floor(src)), in_size - 1)
        i1 = min(i0 + 1, in_size - 1)
        frac = src - i0
        m[i, i0] += 1.0 - frac
        m[i, i1] += frac
    return m


def make_cbr_params(key, cin, cout):
    """Conv2d(1x1) + BatchNorm2d(inference) with the BN folded into (w, b)."""
    k1, k2, k3, k4, k5, k6 = jax.random.split(key, 6)
    w = 0.1 * jax.random.normal(k1, (cin, cout), jnp.float32)
    b_conv = 0.1 * jax.random.normal(k2, (cout,), jnp.float32)
    gamma = 1.0 + 0.1 * jax.random.normal(k3, (cout,), jnp.float32)
    beta = 0.1 * jax.random.normal(k4, (cout,), jnp.float32)
    mean = 0.1 * jax.random.normal(k5, (cout,), jnp.float32)
    var = 1.0 + 0.1 * jnp.abs(jax.random.normal(k6, (cout,), jnp.float32))
    scale = gamma / jnp.sqrt(var + 1e-5)
    w_eff = w * scale[None, :]                 # fold BN scale into the weights
    b_eff = (b_conv - mean) * scale + beta     # fold BN shift into the bias
    return w_eff, b_eff


def fpn_layer_forward(x_nchw, ref_nchw, p1, p2, *, c_block=128):
    """FPNLayer.forward(x, ref) with BN in inference mode (folded params)."""
    n, cin, hx, wx = x_nchw.shape
    _, cout, hr, wr = ref_nchw.shape
    w1, b1 = p1
    w2, b2 = p2

    cin_p = _round_up(max(cin, 1), 128)
    cout_p = _round_up(max(cout, 1), 128)
    cblk = min(c_block, cout_p)

    # NCHW -> NHWC once, cast to bf16, zero-pad channels to lane-dense widths.
    x = jnp.transpose(x_nchw, (0, 2, 3, 1)).astype(jnp.bfloat16)
    x = jnp.pad(x, ((0, 0), (0, 0), (0, 0), (0, cin_p - cin)))
    r = jnp.transpose(ref_nchw, (0, 2, 3, 1)).astype(jnp.bfloat16)
    r = jnp.pad(r, ((0, 0), (0, 0), (0, 0), (0, cout_p - cout)))

    w1p = jnp.pad(w1.astype(jnp.bfloat16),
                  ((0, cin_p - cin), (0, cout_p - cout)))
    b1p = jnp.pad(b1.reshape(1, cout).astype(jnp.float32),
                  ((0, 0), (0, cout_p - cout)))
    w2p = jnp.pad(w2.astype(jnp.bfloat16),
                  ((0, cout_p - cout), (0, cout_p - cout)))
    b2p = jnp.pad(b2.reshape(1, cout).astype(jnp.float32),
                  ((0, 0), (0, cout_p - cout)))

    mh = jnp.asarray(pt_bilinear_matrix(hr, hx), jnp.bfloat16)
    mw = jnp.asarray(pt_bilinear_matrix(wr, wx), jnp.bfloat16)

    grid = (n, cout_p // cblk)
    kernel = functools.partial(fpn_layer_kernel, hx=hx, wx=wx, hr=hr, wr=wr)

    flops = 2 * n * (hx * wx * cin_p * cout_p          # conv1
                     + hx * wr * wx * cout_p           # W resize
                     + hr * hx * wr * cout_p           # H resize
                     + hr * wr * cout_p * cout_p)      # conv2
    bytes_accessed = int(
        (x.size + r.size + w1p.size + w2p.size + mh.size + mw.size) * 2
        + (b1p.size + b2p.size) * 4
        + n * hr * wr * cout_p * 4)

    out = pl.pallas_call(
        kernel,
        out_shape=jax.ShapeDtypeStruct((n, hr, wr, cout_p), jnp.float32),
        grid_spec=pltpu.PrefetchScalarGridSpec(
            num_scalar_prefetch=0,
            grid=grid,
            in_specs=[
                pl.BlockSpec((1, hx, wx, cin_p), lambda b, j: (b, 0, 0, 0)),
                pl.BlockSpec((cin_p, cblk), lambda b, j: (0, j)),
                pl.BlockSpec((1, cblk), lambda b, j: (0, j)),
                pl.BlockSpec((1, hr, wr, cout_p), lambda b, j: (b, 0, 0, 0)),
                pl.BlockSpec((cout_p, cblk), lambda b, j: (0, j)),
                pl.BlockSpec((1, cblk), lambda b, j: (0, j)),
                pl.BlockSpec((hr, hx), lambda b, j: (0, 0)),
                pl.BlockSpec((wr, wx), lambda b, j: (0, 0)),
            ],
            out_specs=pl.BlockSpec((1, hr, wr, cblk), lambda b, j: (b, 0, 0, j)),
        ),
        compiler_params=pltpu.CompilerParams(
            # batch and out-channel blocks are independent -> both parallel
            # (shards across the two TensorCores on v7x; harmless elsewhere).
            dimension_semantics=("parallel", "parallel"),
            # Explicit, generation-safe limit; tune larger on v5e/v6e (128 MiB
            # physical) and keep <= ~48 MiB on v7x for production shapes.
            vmem_limit_bytes=32 * 1024 * 1024,
        ),
        cost_estimate=pl.CostEstimate(flops=flops, transcendentals=0,
                                      bytes_accessed=bytes_accessed),
    )(x, w1p, b1p, r, w2p, b2p, mh, mw)

    out = out[..., :cout]                        # drop the channel padding
    return jnp.transpose(out, (0, 3, 1, 2))      # back to NCHW


# ----------------------------------------------------------------------------
# Pure-JAX reference mirroring the kernel's bf16 quantization points
# ----------------------------------------------------------------------------
def fpn_layer_reference(x_nchw, ref_nchw, p1, p2):
    w1, b1 = p1
    w2, b2 = p2
    _, _, hx, wx = x_nchw.shape
    _, _, hr, wr = ref_nchw.shape

    def q(v):  # bf16 round-trip, matching what the kernel feeds the MXU
        return v.astype(jnp.bfloat16).astype(jnp.float32)

    x = q(jnp.transpose(x_nchw, (0, 2, 3, 1)))
    r = q(jnp.transpose(ref_nchw, (0, 2, 3, 1)))
    mh = q(jnp.asarray(pt_bilinear_matrix(hr, hx), jnp.float32))
    mw = q(jnp.asarray(pt_bilinear_matrix(wr, wx), jnp.float32))

    y1 = jnp.maximum(jnp.einsum('nhwc,cd->nhwd', x, q(w1)) + b1, 0.0)
    y1 = q(y1)
    a = q(jnp.einsum('sw,nhwc->nhsc', mw, y1))        # W resize
    up = jnp.einsum('rh,nhsc->nrsc', mh, a)           # H resize
    y2 = jnp.maximum(jnp.einsum('nhwc,cd->nhwd', r, q(w2)) + b2, 0.0)
    return jnp.transpose(up + y2, (0, 3, 1, 2))


if __name__ == "__main__":
    key = jax.random.PRNGKey(0)
    kx, kr, kp1, kp2 = jax.random.split(key, 4)

    # Small shapes consistent with FPNLayer: coarse top-down map x upsampled
    # to the lateral map's resolution.
    n, cin, cout = 2, 32, 16
    hx, wx = 8, 8       # x spatial size
    hr, wr = 16, 16     # ref (and output) spatial size

    x = jax.random.normal(kx, (n, cin, hx, wx), jnp.float32)
    ref = jax.random.normal(kr, (n, cout, hr, wr), jnp.float32)
    p1 = make_cbr_params(kp1, cin, cout)    # conv1: d_in -> d_out
    p2 = make_cbr_params(kp2, cout, cout)   # conv2: d_out -> d_out

    out = fpn_layer_forward(x, ref, p1, p2)
    out = jax.block_until_ready(out)
    assert out.shape == (n, cout, hr, wr)

    out_ref = jax.block_until_ready(fpn_layer_reference(x, ref, p1, p2))
    np.testing.assert_allclose(np.asarray(out), np.asarray(out_ref),
                               rtol=1e-2, atol=1e-2)

    print("KERNEL_OK")
</pallas_src>

<mosaic_0001>
module attributes {stable_mosaic.version = 11 : i64} {
  func.func @fpn_layer_kernel(%arg0: i32, %arg1: i32, %arg2: memref<1x8x8x128xbf16, #tpu.memory_space<vmem>>, %arg3: memref<128x128xbf16, #tpu.memory_space<vmem>>, %arg4: memref<1x128xf32, #tpu.memory_space<vmem>>, %arg5: memref<1x16x16x128xbf16, #tpu.memory_space<vmem>>, %arg6: memref<128x128xbf16, #tpu.memory_space<vmem>>, %arg7: memref<1x128xf32, #tpu.memory_space<vmem>>, %arg8: memref<16x8xbf16, #tpu.memory_space<vmem>>, %arg9: memref<16x8xbf16, #tpu.memory_space<vmem>>, %arg10: memref<1x16x16x128xf32, #tpu.memory_space<vmem>>) attributes {dimension_semantics = [#tpu.dimension_semantics<parallel>, #tpu.dimension_semantics<parallel>], iteration_bounds = array<i64: 2, 1>, scalar_prefetch = 0 : i64, scratch_operands = 0 : i64, tpu.core_type = #tpu.core_type<tc>, window_params = [{transform_indices = @transform_0, window_bounds = array<i64: 1, 8, 8, 128>}, {transform_indices = @transform_1, window_bounds = array<i64: 128, 128>}, {transform_indices = @transform_2, window_bounds = array<i64: 1, 128>}, {transform_indices = @transform_3, window_bounds = array<i64: 1, 16, 16, 128>}, {transform_indices = @transform_4, window_bounds = array<i64: 128, 128>}, {transform_indices = @transform_5, window_bounds = array<i64: 1, 128>}, {pipeline_mode = #tpu.pipeline_mode<synchronous>, transform_indices = @transform_6, window_bounds = array<i64: 16, 8>}, {pipeline_mode = #tpu.pipeline_mode<synchronous>, transform_indices = @transform_7, window_bounds = array<i64: 16, 8>}, {transform_indices = @transform_8, window_bounds = array<i64: 1, 16, 16, 128>}]} {
    %c0 = arith.constant 0 : index
    %c0_0 = arith.constant 0 : index
    %c0_1 = arith.constant 0 : index
    %c0_2 = arith.constant 0 : index
    %0 = vector.load %arg2[%c0, %c0_0, %c0_1, %c0_2] : memref<1x8x8x128xbf16, #tpu.memory_space<vmem>>, vector<1x8x8x128xbf16>
    %1 = vector.shape_cast %0 : vector<1x8x8x128xbf16> to vector<8x8x128xbf16>
    %2 = vector.shape_cast %1 : vector<8x8x128xbf16> to vector<64x128xbf16>
    %c0_3 = arith.constant 0 : index
    %c0_4 = arith.constant 0 : index
    %3 = vector.load %arg3[%c0_3, %c0_4] : memref<128x128xbf16, #tpu.memory_space<vmem>>, vector<128x128xbf16>
    %cst = arith.constant dense<0.000000e+00> : vector<64x128xf32>
    %4 = tpu.matmul %2, %3, %cst {dimension_numbers = #tpu.dot_dimension_numbers<[1], [0], [0], [1], [0, 0, 1, 1], [], []>} : vector<64x128xbf16>, vector<128x128xbf16>, vector<64x128xf32> -> vector<64x128xf32>
    %c0_5 = arith.constant 0 : index
    %c0_6 = arith.constant 0 : index
    %5 = vector.load %arg4[%c0_5, %c0_6] : memref<1x128xf32, #tpu.memory_space<vmem>>, vector<1x128xf32>
    %6 = vector.broadcast %5 : vector<1x128xf32> to vector<64x128xf32>
    %7 = arith.addf %4, %6 : vector<64x128xf32>
    %cst_7 = arith.constant 0.000000e+00 : f32
    %8 = vector.broadcast %cst_7 : f32 to vector<64x128xf32>
    %9 = arith.maximumf %7, %8 : vector<64x128xf32>
    %10 = arith.truncf %9 : vector<64x128xf32> to vector<64x128xbf16>
    %11 = vector.shape_cast %10 : vector<64x128xbf16> to vector<8x8x128xbf16>
    %c0_8 = arith.constant 0 : index
    %c0_9 = arith.constant 0 : index
    %12 = vector.load %arg9[%c0_8, %c0_9] : memref<16x8xbf16, #tpu.memory_space<vmem>>, vector<16x8xbf16>
    %13 = vector.shape_cast %12 : vector<16x8xbf16> to vector<1x16x8xbf16>
    %14 = vector.shape_cast %13 : vector<1x16x8xbf16> to vector<1x16x8xbf16>
    %15 = vector.broadcast %14 : vector<1x16x8xbf16> to vector<8x16x8xbf16>
    "tpu.trace_start"() <{level = 10 : i32, message = "hsw,hwc->hsc"}> : () -> ()
    %cst_10 = arith.constant dense<0.000000e+00> : vector<8x16x128xf32>
    %16 = tpu.matmul %15, %11, %cst_10 {dimension_numbers = #tpu.dot_dimension_numbers<[2], [1], [1], [2], [0, 0, 0, 1, 1, 2], [0], [0]>} : vector<8x16x8xbf16>, vector<8x8x128xbf16>, vector<8x16x128xf32> -> vector<8x16x128xf32>
    "tpu.trace_stop"() : () -> ()
    %17 = arith.truncf %16 : vector<8x16x128xf32> to vector<8x16x128xbf16>
    %18 = vector.shape_cast %17 : vector<8x16x128xbf16> to vector<8x2048xbf16>
    %c0_11 = arith.constant 0 : index
    %c0_12 = arith.constant 0 : index
    %19 = vector.load %arg8[%c0_11, %c0_12] : memref<16x8xbf16, #tpu.memory_space<vmem>>, vector<16x8xbf16>
    %cst_13 = arith.constant dense<0.000000e+00> : vector<16x2048xf32>
    %20 = tpu.matmul %19, %18, %cst_13 {dimension_numbers = #tpu.dot_dimension_numbers<[1], [0], [0], [1], [0, 0, 1, 1], [], []>} : vector<16x8xbf16>, vector<8x2048xbf16>, vector<16x2048xf32> -> vector<16x2048xf32>
    %21 = vector.shape_cast %20 : vector<16x2048xf32> to vector<16x16x128xf32>
    %c0_14 = arith.constant 0 : index
    %c0_15 = arith.constant 0 : index
    %c0_16 = arith.constant 0 : index
    %c0_17 = arith.constant 0 : index
    %22 = vector.load %arg5[%c0_14, %c0_15, %c0_16, %c0_17] : memref<1x16x16x128xbf16, #tpu.memory_space<vmem>>, vector<1x16x16x128xbf16>
    %23 = vector.shape_cast %22 : vector<1x16x16x128xbf16> to vector<16x16x128xbf16>
    %24 = vector.shape_cast %23 : vector<16x16x128xbf16> to vector<256x128xbf16>
    %c0_18 = arith.constant 0 : index
    %c0_19 = arith.constant 0 : index
    %25 = vector.load %arg6[%c0_18, %c0_19] : memref<128x128xbf16, #tpu.memory_space<vmem>>, vector<128x128xbf16>
    %cst_20 = arith.constant dense<0.000000e+00> : vector<256x128xf32>
    %26 = tpu.matmul %24, %25, %cst_20 {dimension_numbers = #tpu.dot_dimension_numbers<[1], [0], [0], [1], [0, 0, 1, 1], [], []>} : vector<256x128xbf16>, vector<128x128xbf16>, vector<256x128xf32> -> vector<256x128xf32>
    %c0_21 = arith.constant 0 : index
    %c0_22 = arith.constant 0 : index
    %27 = vector.load %arg7[%c0_21, %c0_22] : memref<1x128xf32, #tpu.memory_space<vmem>>, vector<1x128xf32>
    %28 = vector.broadcast %27 : vector<1x128xf32> to vector<256x128xf32>
    %29 = arith.addf %26, %28 : vector<256x128xf32>
    %cst_23 = arith.constant 0.000000e+00 : f32
    %30 = vector.broadcast %cst_23 : f32 to vector<256x128xf32>
    %31 = arith.maximumf %29, %30 : vector<256x128xf32>
    %32 = vector.shape_cast %31 : vector<256x128xf32> to vector<16x16x128xf32>
    %33 = arith.addf %21, %32 : vector<16x16x128xf32>
    %c0_24 = arith.constant 0 : index
    %c0_25 = arith.constant 0 : index
    %c0_26 = arith.constant 0 : index
    %c0_27 = arith.constant 0 : index
    %34 = vector.load %arg10[%c0_24, %c0_25, %c0_26, %c0_27] : memref<1x16x16x128xf32, #tpu.memory_space<vmem>>, vector<1x16x16x128xf32>
    %35 = vector.shape_cast %34 : vector<1x16x16x128xf32> to vector<16x16x128xf32>
    %36 = vector.shape_cast %33 : vector<16x16x128xf32> to vector<1x16x16x128xf32>
    tpu.vector_store %arg10[%c0_24, %c0_25, %c0_26, %c0_27], %36 {strides = array<i32>} : memref<1x16x16x128xf32, #tpu.memory_space<vmem>>, vector<1x16x16x128xf32>,
    return
  }
  func.func @transform_0(%arg0: i32, %arg1: i32) -> (i32, i32, i32, i32) {
    %c0_i32 = arith.constant 0 : i32
    %c0_i32_0 = arith.constant 0 : i32
    %c0_i32_1 = arith.constant 0 : i32
    %c0_i32_2 = arith.constant 0 : i32
    return %arg0, %c0_i32, %c0_i32_0, %c0_i32_1 : i32, i32, i32, i32
  }
  func.func @transform_1(%arg0: i32, %arg1: i32) -> (i32, i32) {
    %c0_i32 = arith.constant 0 : i32
    %c0_i32_0 = arith.constant 0 : i32
    return %c0_i32, %arg1 : i32, i32
  }
  func.func @transform_2(%arg0: i32, %arg1: i32) -> (i32, i32) {
    %c0_i32 = arith.constant 0 : i32
    %c0_i32_0 = arith.constant 0 : i32
    return %c0_i32, %arg1 : i32, i32
  }
  func.func @transform_3(%arg0: i32, %arg1: i32) -> (i32, i32, i32, i32) {
    %c0_i32 = arith.constant 0 : i32
    %c0_i32_0 = arith.constant 0 : i32
    %c0_i32_1 = arith.constant 0 : i32
    %c0_i32_2 = arith.constant 0 : i32
    return %arg0, %c0_i32, %c0_i32_0, %c0_i32_1 : i32, i32, i32, i32
  }
  func.func @transform_4(%arg0: i32, %arg1: i32) -> (i32, i32) {
    %c0_i32 = arith.constant 0 : i32
    %c0_i32_0 = arith.constant 0 : i32
    return %c0_i32, %arg1 : i32, i32
  }
  func.func @transform_5(%arg0: i32, %arg1: i32) -> (i32, i32) {
    %c0_i32 = arith.constant 0 : i32
    %c0_i32_0 = arith.constant 0 : i32
    return %c0_i32, %arg1 : i32, i32
  }
  func.func @transform_6(%arg0: i32, %arg1: i32) -> (i32, i32) {
    %c0_i32 = arith.constant 0 : i32
    %c0_i32_0 = arith.constant 0 : i32
    %c0_i32_1 = arith.constant 0 : i32
    return %c0_i32, %c0_i32_0 : i32, i32
  }
  func.func @transform_7(%arg0: i32, %arg1: i32) -> (i32, i32) {
    %c0_i32 = arith.constant 0 : i32
    %c0_i32_0 = arith.constant 0 : i32
    %c0_i32_1 = arith.constant 0 : i32
    return %c0_i32, %c0_i32_0 : i32, i32
  }
  func.func @transform_8(%arg0: i32, %arg1: i32) -> (i32, i32, i32, i32) {
    %c0_i32 = arith.constant 0 : i32
    %c0_i32_0 = arith.constant 0 : i32
    %c0_i32_1 = arith.constant 0 : i32
    return %arg0, %c0_i32, %c0_i32_0, %arg1 : i32, i32, i32, i32
  }
}

</mosaic_0001>

<llo_original>
// kernel: tpu_custom_call.1
$region0: #{tpu_custom_call.1}
  #allocation0 [shape = 'u32[]', space=smem, size = 0x4, offset = 0x4, fixed_abs, tag = 'smem constant byte address 0x4 - core index']
  #allocation1 [shape = 'u32[72,128]{1,0:T(1,128)}', space=vmem, size = 0x9000, scoped, tag = 'internal scratch']
  %s0 = inlined_call_operand.hbm [shape: bf16[2,8,8,128], index: 0, kind: input, shape index: {}]
  %s1 = inlined_call_operand.hbm [shape: bf16[128,128], index: 1, kind: input, shape index: {}]
  %s2 = inlined_call_operand.vmem [shape: f32[1,128], index: 2, kind: input, shape index: {}]
  %s3 = inlined_call_operand.hbm [shape: bf16[2,16,16,128], index: 3, kind: input, shape index: {}]
  %s4 = inlined_call_operand.hbm [shape: bf16[128,128], index: 4, kind: input, shape index: {}]
  %s5 = inlined_call_operand.vmem [shape: f32[1,128], index: 5, kind: input, shape index: {}]
  %s6 = inlined_call_operand.vmem [shape: bf16[16,8], index: 6, kind: input, shape index: {}]
  %s7 = inlined_call_operand.vmem [shape: bf16[16,8], index: 7, kind: input, shape index: {}]
  %s8 = inlined_call_operand.hbm [shape: f32[2,16,16,128], index: 8, kind: output, shape index: {}]
  %s9 = sld [smem:[#allocation0]]
  $region81: #{tpu_custom_call.1} parent=0
    _
  %s11 = ssub.s32 1, %s9
  %s12 = scalar_select 0, %s11, %s9
  $region1: #{tpu_custom_call.1} parent=0
    #allocation2 [shape = 'u8[32768]{0}', space=vmem, size = 0x8000, scoped, tag = 'input window, operand 0']
    #allocation3 [shape = 's32[2]{0}', space=sflag, size = 0x8, scoped, tag = 'scoped memory for tpu_custom_call.1']
    #allocation4 [shape = 's32[2]{0}', space=sflag, size = 0x8, scoped, tag = 'scoped memory for tpu_custom_call.1']
    #allocation5 [shape = 'u8[32768]{0}', space=vmem, size = 0x8000, scoped, tag = 'input window, operand 1, single buffered']
    #allocation6 [shape = 's32[1]{0}', space=sflag, size = 0x4, scoped, tag = 'scoped memory for tpu_custom_call.1']
    #allocation7 [shape = 'u8[131072]{0}', space=vmem, size = 0x20000, scoped, tag = 'input window, operand 3']
    #allocation8 [shape = 'u8[32768]{0}', space=vmem, size = 0x8000, scoped, tag = 'input window, operand 4, single buffered']
    #allocation9 [shape = 'u8[262144]{0}', space=vmem, size = 0x40000, scoped, tag = 'output window, operand 0']
    %13 = vsyncpa [#allocation3], 0
    %s14 = scalar_lea.sflag [#allocation3], 1
    %15 = vsyncpa %s14, 0
    %16 = vsyncpa [#allocation6], 0
    %17 = vsyncpa [#allocation4], 0
    %s18 = scalar_lea.sflag [#allocation4], 1
    %19 = vsyncpa %s18, 0
    loop: start=0, step=1, limit=4
    $region2: #{tpu_custom_call.1} parent=1 // loop_pre_header
      _
    $region3: #{tpu_custom_call.1} parent=1 // loop_header
      %s21 = sphi 0, %s25
      %p22 = scmp.ge.s32.totalorder %s21, 4
      %s28 = sphi 0, %s40
      %s29 = sphi 0, %s36
      %s30 = sphi 0, %s28
      %s31 = sphi 0, %s29
      %s32 = sphi 0, %s30
      %s33 = sphi 0, %s31
      %s43 = sphi 0, %s45
      %s46 = sphi 0, %s43
      %s47 = sphi 0, %s46
      %s63 = sphi 0, %s47
      %s69 = sphi 0, %s71
      %s72 = sphi 0, %s69
      %s73 = sphi 0, %s72
      %s89 = sphi 0, %s73
      %s95 = sphi 0, %s97
      %s98 = sphi 0, %s95
      %s99 = sphi 0, %s98
      %s115 = sphi 0, %s99
      %s121 = sphi 0, %s123
      %s124 = sphi 0, %s121
      %s125 = sphi 0, %s124
      %s141 = sphi 0, %s125
      %s147 = sphi 0, %s149
      %s150 = sphi 0, %s147
      %s151 = sphi 0, %s150
      %s167 = sphi 0, %s151
      %s173 = sphi 0, %s175
      %s176 = sphi 0, %s173
      %s177 = sphi 0, %s176
      %s193 = sphi 0, %s177
      %s197 = sphi 0, %s197
      %s199 = sphi 0, %s197
      %s200 = sphi 0, %s199
      %s214 = sphi 0, %s200
      %s218 = sphi 0, %s218
      %s220 = sphi 0, %s218
      %s221 = sphi 0, %s220
      %s235 = sphi 0, %s221
      %s243 = sphi 0, %s245
      %s246 = sphi 0, %s243
      %s247 = sphi 0, %s246
      %s263 = sphi 0, %s247
    $region4: #{tpu_custom_call.1} parent=1 // loop_header_branch
      %24 = sbr.rel (%p22) target = $region8
    $region5: #{tpu_custom_call.1} parent=1 // loop_body
      %s26 = ssub.s32 %s21, 1
      %s27 = ssub.s32 %s21, 2
      %s34 = sadd.s32 1, %s29
      %p35 = scmp.ge.s32.totalorder %s34, 1
      %s36 = scalar_select %p35, 0, %s34
      %s37 = sadd.s32 1, %s28
      %s38 = scalar_select %p35, %s37, %s28
      %p39 = scmp.ge.s32.totalorder %s38, 2
      %s40 = scalar_select %p39, 0, %s38
      %s41 = ssub.s32 %s28, %s40
      %p42 = scmp.eq.s32.totalorder %s41, 0
      %s44 = sadd.s32 %s43, 1
      %s45 = scalar_select %p42, %s43, %s44
      %p48 = pneg %p42
      %p49 = scmp.eq.s32.totalorder %s21, 1
      %p50 = por %p48, %p49
      %p51 = scmp.ne.s32.totalorder %s43, %s46
      %p52 = scmp.eq.s32.totalorder %s21, 0
      %p53 = por %p51, %p52
      %p54 = scmp.ne.s32.totalorder %s43, %s46
      %p55 = scmp.eq.s32.totalorder %s26, 1
      %p56 = por %p54, %p55
      %p57 = scmp.ne.s32.totalorder %s46, %s47
      %p58 = scmp.eq.s32.totalorder %s26, 0
      %p59 = por %p57, %p58
      %p60 = scmp.ne.s32.totalorder %s46, %s47
      %p61 = scmp.eq.s32.totalorder %s27, 1
      %p62 = por %p60, %p61
      %p64 = scmp.ne.s32.totalorder %s47, %s63
      %p65 = scmp.eq.s32.totalorder %s27, 0
      %p66 = por %p64, %p65
      %s67 = ssub.s32 %s29, %s36
      %p68 = scmp.eq.s32.totalorder %s67, 0
      %s70 = sadd.s32 %s69, 1
      %s71 = scalar_select %p68, %s69, %s70
      %p74 = pneg %p68
      %p75 = scmp.eq.s32.totalorder %s21, 1
      %p76 = por %p74, %p75
      %p77 = scmp.ne.s32.totalorder %s69, %s72
      %p78 = scmp.eq.s32.totalorder %s21, 0
      %p79 = por %p77, %p78
      %p80 = scmp.ne.s32.totalorder %s69, %s72
      %p81 = scmp.eq.s32.totalorder %s26, 1
      %p82 = por %p80, %p81
      %p83 = scmp.ne.s32.totalorder %s72, %s73
      %p84 = scmp.eq.s32.totalorder %s26, 0
      %p85 = por %p83, %p84
      %p86 = scmp.ne.s32.totalorder %s72, %s73
      %p87 = scmp.eq.s32.totalorder %s27, 1
      %p88 = por %p86, %p87
      %p90 = scmp.ne.s32.totalorder %s73, %s89
      %p91 = scmp.eq.s32.totalorder %s27, 0
      %p92 = por %p90, %p91
      %s93 = ssub.s32 %s29, %s36
      %p94 = scmp.eq.s32.totalorder %s93, 0
      %s96 = sadd.s32 %s95, 1
      %s97 = scalar_select %p94, %s95, %s96
      %p100 = pneg %p94
      %p101 = scmp.eq.s32.totalorder %s21, 1
      %p102 = por %p100, %p101
      %p103 = scmp.ne.s32.totalorder %s95, %s98
      %p104 = scmp.eq.s32.totalorder %s21, 0
      %p105 = por %p103, %p104
      %p106 = scmp.ne.s32.totalorder %s95, %s98
      %p107 = scmp.eq.s32.totalorder %s26, 1
      %p108 = por %p106, %p107
      %p109 = scmp.ne.s32.totalorder %s98, %s99
      %p110 = scmp.eq.s32.totalorder %s26, 0
      %p111 = por %p109, %p110
      %p112 = scmp.ne.s32.totalorder %s98, %s99
      %p113 = scmp.eq.s32.totalorder %s27, 1
      %p114 = por %p112, %p113
      %p116 = scmp.ne.s32.totalorder %s99, %s115
      %p117 = scmp.eq.s32.totalorder %s27, 0
      %p118 = por %p116, %p117
      %s119 = ssub.s32 %s28, %s40
      %p120 = scmp.eq.s32.totalorder %s119, 0
      %s122 = sadd.s32 %s121, 1
      %s123 = scalar_select %p120, %s121, %s122
      %p126 = pneg %p120
      %p127 = scmp.eq.s32.totalorder %s21, 1
      %p128 = por %p126, %p127
      %p129 = scmp.ne.s32.totalorder %s121, %s124
      %p130 = scmp.eq.s32.totalorder %s21, 0
      %p131 = por %p129, %p130
      %p132 = scmp.ne.s32.totalorder %s121, %s124
      %p133 = scmp.eq.s32.totalorder %s26, 1
      %p134 = por %p132, %p133
      %p135 = scmp.ne.s32.totalorder %s124, %s125
      %p136 = scmp.eq.s32.totalorder %s26, 0
      %p137 = por %p135, %p136
      %p138 = scmp.ne.s32.totalorder %s124, %s125
      %p139 = scmp.eq.s32.totalorder %s27, 1
      %p140 = por %p138, %p139
      %p142 = scmp.ne.s32.totalorder %s125, %s141
      %p143 = scmp.eq.s32.totalorder %s27, 0
      %p144 = por %p142, %p143
      %s145 = ssub.s32 %s29, %s36
      %p146 = scmp.eq.s32.totalorder %s145, 0
      %s148 = sadd.s32 %s147, 1
      %s149 = scalar_select %p146, %s147, %s148
      %p152 = pneg %p146
      %p153 = scmp.eq.s32.totalorder %s21, 1
      %p154 = por %p152, %p153
      %p155 = scmp.ne.s32.totalorder %s147, %s150
      %p156 = scmp.eq.s32.totalorder %s21, 0
      %p157 = por %p155, %p156
      %p158 = scmp.ne.s32.totalorder %s147, %s150
      %p159 = scmp.eq.s32.totalorder %s26, 1
      %p160 = por %p158, %p159
      %p161 = scmp.ne.s32.totalorder %s150, %s151
      %p162 = scmp.eq.s32.totalorder %s26, 0
      %p163 = por %p161, %p162
      %p164 = scmp.ne.s32.totalorder %s150, %s151
      %p165 = scmp.eq.s32.totalorder %s27, 1
      %p166 = por %p164, %p165
      %p168 = scmp.ne.s32.totalorder %s151, %s167
      %p169 = scmp.eq.s32.totalorder %s27, 0
      %p170 = por %p168, %p169
      %s171 = ssub.s32 %s29, %s36
      %p172 = scmp.eq.s32.totalorder %s171, 0
      %s174 = sadd.s32 %s173, 1
      %s175 = scalar_select %p172, %s173, %s174
      %p178 = pneg %p172
      %p179 = scmp.eq.s32.totalorder %s21, 1
      %p180 = por %p178, %p179
      %p181 = scmp.ne.s32.totalorder %s173, %s176
      %p182 = scmp.eq.s32.totalorder %s21, 0
      %p183 = por %p181, %p182
      %p184 = scmp.ne.s32.totalorder %s173, %s176
      %p185 = scmp.eq.s32.totalorder %s26, 1
      %p186 = por %p184, %p185
      %p187 = scmp.ne.s32.totalorder %s176, %s177
      %p188 = scmp.eq.s32.totalorder %s26, 0
      %p189 = por %p187, %p188
      %p190 = scmp.ne.s32.totalorder %s176, %s177
      %p191 = scmp.eq.s32.totalorder %s27, 1
      %p192 = por %p190, %p191
      %p194 = scmp.ne.s32.totalorder %s177, %s193
      %p195 = scmp.eq.s32.totalorder %s27, 0
      %p196 = por %p194, %p195
      %s198 = sadd.s32 %s197, 1
      %p201 = scmp.eq.s32.totalorder %s21, 1
      %p202 = scmp.ne.s32.totalorder %s197, %s199
      %p203 = scmp.eq.s32.totalorder %s21, 0
      %p204 = por %p202, %p203
      %p205 = scmp.ne.s32.totalorder %s197, %s199
      %p206 = scmp.eq.s32.totalorder %s26, 1
      %p207 = por %p205, %p206
      %p208 = scmp.ne.s32.totalorder %s199, %s200
      %p209 = scmp.eq.s32.totalorder %s26, 0
      %p210 = por %p208, %p209
      %p211 = scmp.ne.s32.totalorder %s199, %s200
      %p212 = scmp.eq.s32.totalorder %s27, 1
      %p213 = por %p211, %p212
      %p215 = scmp.ne.s32.totalorder %s200, %s214
      %p216 = scmp.eq.s32.totalorder %s27, 0
      %p217 = por %p215, %p216
      %s219 = sadd.s32 %s218, 1
      %p222 = scmp.eq.s32.totalorder %s21, 1
      %p223 = scmp.ne.s32.totalorder %s218, %s220
      %p224 = scmp.eq.s32.totalorder %s21, 0
      %p225 = por %p223, %p224
      %p226 = scmp.ne.s32.totalorder %s218, %s220
      %p227 = scmp.eq.s32.totalorder %s26, 1
      %p228 = por %p226, %p227
      %p229 = scmp.ne.s32.totalorder %s220, %s221
      %p230 = scmp.eq.s32.totalorder %s26, 0
      %p231 = por %p229, %p230
      %p232 = scmp.ne.s32.totalorder %s220, %s221
      %p233 = scmp.eq.s32.totalorder %s27, 1
      %p234 = por %p232, %p233
      %p236 = scmp.ne.s32.totalorder %s221, %s235
      %p237 = scmp.eq.s32.totalorder %s27, 0
      %p238 = por %p236, %p237
      %s239 = ssub.s32 %s28, %s40
      %s240 = ssub.s32 %s29, %s36
      %s241 = sor.u32 %s239, %s240
      %p242 = scmp.eq.s32.totalorder %s241, 0
      %s244 = sadd.s32 %s243, 1
      %s245 = scalar_select %p242, %s243, %s244
      %p248 = pneg %p242
      %p249 = scmp.eq.s32.totalorder %s21, 1
      %p250 = por %p248, %p249
      %p251 = scmp.ne.s32.totalorder %s243, %s246
      %p252 = scmp.eq.s32.totalorder %s21, 0
      %p253 = por %p251, %p252
      %p254 = scmp.ne.s32.totalorder %s243, %s246
      %p255 = scmp.eq.s32.totalorder %s26, 1
      %p256 = por %p254, %p255
      %p257 = scmp.ne.s32.totalorder %s246, %s247
      %p258 = scmp.eq.s32.totalorder %s26, 0
      %p259 = por %p257, %p258
      %p260 = scmp.ne.s32.totalorder %s246, %s247
      %p261 = scmp.eq.s32.totalorder %s27, 1
      %p262 = por %p260, %p261
      %p264 = scmp.ne.s32.totalorder %s247, %s263
      %p265 = scmp.eq.s32.totalorder %s27, 0
      %p266 = por %p264, %p265
      %p267 = scmp.le.s32.totalorder 1, %s21
      %p268 = scmp.lt.s32.totalorder %s21, 3
      %p269 = pnand %p267, %p268
      %p270 = pneg %p269
      // Predicated region
      $region9: #{tpu_custom_call.1} parent=5 // pred_check
        _
      $region10: #{tpu_custom_call.1} parent=5 // pred_check_branch
        %272 = sbr.rel (%p269) target = $region12
      $region11: #{tpu_custom_call.1} parent=5 // pred_region
        %s273 = ssub.s32 %s21, 1
        // Predicated region
        $region13: #{tpu_custom_call.1} parent=11 // pred_check
          %p274 = pneg %p85
        $region14: #{tpu_custom_call.1} parent=11 // pred_check_branch
          %276 = sbr.rel (%p274) target = $region16
        $region15: #{tpu_custom_call.1} parent=11 // pred_region
          %278 = vsyncadd [#allocation6], 0
          %s279 = smul.addr %s31, 4
          %s280 = scalar_lea.hbm %s1, %s279
          %s281 = sshll.u32 %s280, 4
          %s282 = int_to_ptr.hbm [resolvable:$true] %s281
          %s283 = sshll.u32 [#allocation5], 4
          %s284 = int_to_ptr.vmem [resolvable:$true] %s283
          %289 = dma.hbm_to_vmem [thread:$0]  %s282, 1024, %s284, [#allocation6], 64, 64, 4
        $region16: #{tpu_custom_call.1} parent=11 // pred_fallthru
          _
        // Predicated region
        $region17: #{tpu_custom_call.1} parent=11 // pred_check
          %p290 = pneg %p111
        $region18: #{tpu_custom_call.1} parent=11 // pred_check_branch
          %292 = sbr.rel (%p290) target = $region20
        $region19: #{tpu_custom_call.1} parent=11 // pred_region
          %p293 = scmp.lt.s32.totalorder %s31, 0
          %s294 = scalar_select %p293, %s31, 0
          %s295 = scalar_lea.vmem %s2, %s294
        $region20: #{tpu_custom_call.1} parent=11 // pred_fallthru
          _
        // Predicated region
        $region21: #{tpu_custom_call.1} parent=11 // pred_check
          %p296 = pneg %p163
        $region22: #{tpu_custom_call.1} parent=11 // pred_check_branch
          %298 = sbr.rel (%p296) target = $region24
        $region23: #{tpu_custom_call.1} parent=11 // pred_region
          %300 = vsyncadd [#allocation6], 0
          %s301 = smul.addr %s31, 4
          %s302 = scalar_lea.hbm %s4, %s301
          %s303 = sshll.u32 %s302, 4
          %s304 = int_to_ptr.hbm [resolvable:$true] %s303
          %s305 = sshll.u32 [#allocation8], 4
          %s306 = int_to_ptr.vmem [resolvable:$true] %s305
          %311 = dma.hbm_to_vmem [thread:$0]  %s304, 1024, %s306, [#allocation6], 64, 64, 4
        $region24: #{tpu_custom_call.1} parent=11 // pred_fallthru
          _
        // Predicated region
        $region25: #{tpu_custom_call.1} parent=11 // pred_check
          %p312 = pneg %p189
        $region26: #{tpu_custom_call.1} parent=11 // pred_check_branch
          %314 = sbr.rel (%p312) target = $region28
        $region27: #{tpu_custom_call.1} parent=11 // pred_region
          %p315 = scmp.lt.s32.totalorder %s31, 0
          %s316 = scalar_select %p315, %s31, 0
          %s317 = scalar_lea.vmem %s5, %s316
        $region28: #{tpu_custom_call.1} parent=11 // pred_fallthru
          _
        // Predicated region
        $region29: #{tpu_custom_call.1} parent=11 // pred_check
          %p318 = pneg %p210
        $region30: #{tpu_custom_call.1} parent=11 // pred_check_branch
          %320 = sbr.rel (%p318) target = $region32
        $region31: #{tpu_custom_call.1} parent=11 // pred_region
          _
        $region32: #{tpu_custom_call.1} parent=11 // pred_fallthru
          _
        // Predicated region
        $region33: #{tpu_custom_call.1} parent=11 // pred_check
          %p321 = pneg %p231
        $region34: #{tpu_custom_call.1} parent=11 // pred_check_branch
          %323 = sbr.rel (%p321) target = $region36
        $region35: #{tpu_custom_call.1} parent=11 // pred_region
          _
        $region36: #{tpu_custom_call.1} parent=11 // pred_fallthru
          _
      $region12: #{tpu_custom_call.1} parent=5 // pred_fallthru
        _
      %p324 = scmp.lt.s32.totalorder %s21, 2
      // Predicated region
      $region37: #{tpu_custom_call.1} parent=5 // pred_check
        %p325 = pneg %p324
      $region38: #{tpu_custom_call.1} parent=5 // pred_check_branch
        %327 = sbr.rel (%p325) target = $region40
      $region39: #{tpu_custom_call.1} parent=5 // pred_region
        // Predicated region
        $region41: #{tpu_custom_call.1} parent=39 // pred_check
          %p328 = pneg %p53
        $region42: #{tpu_custom_call.1} parent=39 // pred_check_branch
          %330 = sbr.rel (%p328) target = $region44
        $region43: #{tpu_custom_call.1} parent=39 // pred_region
          %s331 = sand.u32 %s21, 1
          %s332 = scalar_lea.sflag [#allocation3], %s331
          %s333 = sand.u32 %s43, 1
          %s334 = smul.addr %s333, 32
          %s335 = scalar_lea.vmem [#allocation2], %s334
          %337 = vsyncadd %s332, 0
          %s338 = smul.addr %s28, 8
          %s339 = smul.addr %s338, 4
          %s340 = scalar_lea.hbm %s0, %s339
          %s341 = sshll.u32 %s340, 4
          %s342 = int_to_ptr.hbm [resolvable:$true] %s341
          %s343 = sshll.u32 %s335, 4
          %s344 = int_to_ptr.vmem [resolvable:$true] %s343
          %349 = dma.hbm_to_vmem [thread:$0]  %s342, 512, %s344, %s332, 64, 64, 4
        $region44: #{tpu_custom_call.1} parent=39 // pred_fallthru
          _
        // Predicated region
        $region45: #{tpu_custom_call.1} parent=39 // pred_check
          %p350 = pneg %p131
        $region46: #{tpu_custom_call.1} parent=39 // pred_check_branch
          %352 = sbr.rel (%p350) target = $region48
        $region47: #{tpu_custom_call.1} parent=39 // pred_region
          %s353 = sand.u32 %s21, 1
          %s354 = scalar_lea.sflag [#allocation3], %s353
          %s355 = sand.u32 %s121, 1
          %s356 = smul.addr %s355, 128
          %s357 = scalar_lea.vmem [#allocation7], %s356
          %359 = vsyncadd %s354, 0
          %s360 = smul.addr %s28, 32
          %s361 = smul.addr %s360, 4
          %s362 = scalar_lea.hbm %s3, %s361
          %s363 = sshll.u32 %s362, 4
          %s364 = int_to_ptr.hbm [resolvable:$true] %s363
          %s365 = sshll.u32 %s357, 4
          %s366 = int_to_ptr.vmem [resolvable:$true] %s365
          %371 = dma.hbm_to_vmem [thread:$0]  %s364, 2048, %s366, %s354, 64, 64, 4
        $region48: #{tpu_custom_call.1} parent=39 // pred_fallthru
          _
      $region40: #{tpu_custom_call.1} parent=5 // pred_fallthru
        _
      %p372 = scmp.le.s32.totalorder 1, %s21
      %p373 = scmp.lt.s32.totalorder %s21, 3
      %p374 = pnand %p372, %p373
      %p375 = pneg %p374
      // Predicated region
      $region49: #{tpu_custom_call.1} parent=5 // pred_check
        _
      $region50: #{tpu_custom_call.1} parent=5 // pred_check_branch
        %377 = sbr.rel (%p374) target = $region52
      $region51: #{tpu_custom_call.1} parent=5 // pred_region
        %s378 = ssub.s32 %s21, 1
        %s379 = sand.u32 %s26, 1
        %s380 = scalar_lea.sflag [#allocation3], %s379
        %s381 = sand.u32 %s46, 1
        %s382 = smul.addr %s381, 32
        %s383 = scalar_lea.vmem [#allocation2], %s382
        // Predicated region
        $region53: #{tpu_custom_call.1} parent=51 // pred_check
          %p384 = pneg %p59
        $region54: #{tpu_custom_call.1} parent=51 // pred_check_branch
          %386 = sbr.rel (%p384) target = $region56
        $region55: #{tpu_custom_call.1} parent=51 // pred_region
          %388 = dma.done %s380, 512
        $region56: #{tpu_custom_call.1} parent=51 // pred_fallthru
          _
        // Predicated region
        $region57: #{tpu_custom_call.1} parent=51 // pred_check
          %p389 = pneg %p85
        $region58: #{tpu_custom_call.1} parent=51 // pred_check_branch
          %391 = sbr.rel (%p389) target = $region60
        $region59: #{tpu_custom_call.1} parent=51 // pred_region
          %393 = dma.done [#allocation6], 1024
        $region60: #{tpu_custom_call.1} parent=51 // pred_fallthru
          _
        %s394 = sand.u32 %s26, 1
        %s395 = scalar_lea.sflag [#allocation3], %s394
        %s396 = sand.u32 %s124, 1
        %s397 = smul.addr %s396, 128
        %s398 = scalar_lea.vmem [#allocation7], %s397
        // Predicated region
        $region61: #{tpu_custom_call.1} parent=51 // pred_check
          %p399 = pneg %p137
        $region62: #{tpu_custom_call.1} parent=51 // pred_check_branch
          %401 = sbr.rel (%p399) target = $region64
        $region63: #{tpu_custom_call.1} parent=51 // pred_region
          %403 = dma.done %s395, 2048
        $region64: #{tpu_custom_call.1} parent=51 // pred_fallthru
          _
        // Predicated region
        $region65: #{tpu_custom_call.1} parent=51 // pred_check
          %p404 = pneg %p163
        $region66: #{tpu_custom_call.1} parent=51 // pred_check_branch
          %406 = sbr.rel (%p404) target = $region68
        $region67: #{tpu_custom_call.1} parent=51 // pred_region
          %408 = dma.done [#allocation6], 1024
        $region68: #{tpu_custom_call.1} parent=51 // pred_fallthru
          _
        %s409 = sand.u32 %s26, 1
        %s410 = scalar_lea.sflag [#allocation3], %s409
        %s411 = sand.u32 %s46, 1
        %s412 = smul.addr %s411, 32
        %s413 = scalar_lea.vmem [#allocation2], %s412
        %p414 = pneg %p59
        %p415 = pneg %p56
        %p416 = pneg %p85
        %p417 = pneg %p82
        %p418 = scmp.lt.s32.totalorder %s31, 0
        %s419 = scalar_select %p418, %s31, 0
        %s420 = scalar_lea.vmem %s2, %s419
        %p421 = pneg %p111
        %p422 = pneg %p108
        %s423 = sand.u32 %s26, 1
        %s424 = scalar_lea.sflag [#allocation3], %s423
        %s425 = sand.u32 %s124, 1
        %s426 = smul.addr %s425, 128
        %s427 = scalar_lea.vmem [#allocation7], %s426
        %p428 = pneg %p137
        %p429 = pneg %p134
        %p430 = pneg %p163
        %p431 = pneg %p160
        %p432 = scmp.lt.s32.totalorder %s31, 0
        %s433 = scalar_select %p432, %s31, 0
        %s434 = scalar_lea.vmem %s5, %s433
        %p435 = pneg %p189
        %p436 = pneg %p186
        %p437 = pneg %p210
        %p438 = pneg %p207
        %p439 = pneg %p231
        %p440 = pneg %p228
        %p441 = pneg %p259
        %p442 = pneg %p256
        %s443 = sand.u32 %s246, 1
        %s444 = scalar_lea.sflag [#allocation4], %s443
        %s445 = sand.u32 %s246, 1
        %s446 = smul.addr %s445, 256
        %s447 = scalar_lea.vmem [#allocation9], %s446
        %p448 = scmp.lt.s32.totalorder %s31, 0
        %s449 = scalar_select %p448, %s31, 0
        %s450 = scalar_lea.vmem %s2, %s449
        %p451 = scmp.lt.s32.totalorder %s31, 0
        %s452 = scalar_select %p451, %s31, 0
        %s453 = scalar_lea.vmem %s5, %s452
        %v455 = vld [vmem:[%s383] sm:$0xf]
        %v456 = vld [vmem:[%s383 + $0x4] sm:$0xf]
        %v457 = vld [vmem:[%s383 + $0x8] sm:$0xf]
        %v458 = vld [vmem:[%s383 + $0xc] sm:$0xf]
        %v459 = vld [vmem:[%s383 + $0x10] sm:$0xf]
        %v460 = vld [vmem:[%s383 + $0x14] sm:$0xf]
        %v461 = vld [vmem:[%s383 + $0x18] sm:$0xf]
        %v462 = vld [vmem:[%s383 + $0x1c] sm:$0xf]
        %v463 = vld [vmem:[#allocation5] sm:$0xf]
        %v464 = vld [vmem:[#allocation5 + $0x4] sm:$0xf]
        %v465 = vld [vmem:[#allocation5 + $0x8] sm:$0xf]
        %v466 = vld [vmem:[#allocation5 + $0xc] sm:$0xf]
        %v467 = vld [vmem:[#allocation5 + $0x10] sm:$0xf]
        %v468 = vld [vmem:[#allocation5 + $0x14] sm:$0xf]
        %v469 = vld [vmem:[#allocation5 + $0x18] sm:$0xf]
        %v470 = vld [vmem:[#allocation5 + $0x1c] sm:$0xf]
        %v471 = vld [vmem:[#allocation5 + $0x20] sm:$0xf]
        %v472 = vld [vmem:[#allocation5 + $0x24] sm:$0xf]
        %v473 = vld [vmem:[#allocation5 + $0x28] sm:$0xf]
        %v474 = vld [vmem:[#allocation5 + $0x2c] sm:$0xf]
        %v475 = vld [vmem:[#allocation5 + $0x30] sm:$0xf]
        %v476 = vld [vmem:[#allocation5 + $0x34] sm:$0xf]
        %v477 = vld [vmem:[#allocation5 + $0x38] sm:$0xf]
        %v478 = vld [vmem:[#allocation5 + $0x3c] sm:$0xf]
        %v479 = vld [vmem:[%s450] sm:$0x1]
        %v481 = vperm.slane %v479, 0
        %v491 = vunpack.c.l.b16 %v455
        %v492 = vunpack.c.l.b16 %v456
        %v493 = vunpack.c.l.b16 %v457
        %v494 = vunpack.c.l.b16 %v458
        %v495 = vunpack.c.l.b16 %v459
        %v496 = vunpack.c.l.b16 %v460
        %v497 = vunpack.c.l.b16 %v461
        %v498 = vunpack.c.l.b16 %v462
        %v499 = vpack.c.b16 %v492, %v491
        %v500 = vpack.c.b16 %v494, %v493
        %v501 = vpack.c.b16 %v496, %v495
        %v502 = vpack.c.b16 %v498, %v497
        %v523 = vunpack.c.l.b16 %v463
        %v524 = vunpack.c.l.b16 %v464
        %v525 = vunpack.c.l.b16 %v465
        %v526 = vunpack.c.l.b16 %v466
        %v527 = vunpack.c.l.b16 %v467
        %v528 = vunpack.c.l.b16 %v468
        %v529 = vunpack.c.l.b16 %v469
        %v530 = vunpack.c.l.b16 %v470
        %v531 = vunpack.c.l.b16 %v471
        %v532 = vunpack.c.l.b16 %v472
        %v533 = vunpack.c.l.b16 %v473
        %v534 = vunpack.c.l.b16 %v474
        %v535 = vunpack.c.l.b16 %v475
        %v536 = vunpack.c.l.b16 %v476
        %v537 = vunpack.c.l.b16 %v477
        %v538 = vunpack.c.l.b16 %v478
        %v539 = vpack.c.b16 %v524, %v523
        %v540 = vpack.c.b16 %v526, %v525
        %v541 = vpack.c.b16 %v528, %v527
        %v542 = vpack.c.b16 %v530, %v529
        %v543 = vpack.c.b16 %v532, %v531
        %v544 = vpack.c.b16 %v534, %v533
        %v545 = vpack.c.b16 %v536, %v535
        %v546 = vpack.c.b16 %v538, %v537
        %555 = vmatpush.bf16.msra.mxu0 %v546
        %556 = vmatpush.bf16.msra.mxu0 %v545
        %557 = vmatpush.bf16.msra.mxu0 %v544
        %558 = vmatpush.bf16.msra.mxu0 %v543
        %559 = vmatpush.bf16.msra.mxu0 %v542
        %560 = vmatpush.bf16.msra.mxu0 %v541
        %561 = vmatpush.bf16.msra.mxu0 %v540
        %562 = vmatpush.bf16.msra.mxu0 %v539
        %563 = vmatmul.bf16.gmra.mxu0 %v499
        %v564 = vpop.f32.mrf.mxu0
        %v565 = vadd.f32 %v481, %v564
        %v566 = vpop.f32.mrf.mxu0
        %v567 = vadd.f32 %v481, %v566
        %568 = vmatmul.bf16.gmra.mxu0 %v500
        %v569 = vpop.f32.mrf.mxu0
        %v570 = vadd.f32 %v481, %v569
        %v571 = vpop.f32.mrf.mxu0
        %v572 = vadd.f32 %v481, %v571
        %573 = vmatmul.bf16.gmra.mxu0 %v501
        %v574 = vpop.f32.mrf.mxu0
        %v575 = vadd.f32 %v481, %v574
        %v576 = vpop.f32.mrf.mxu0
        %v577 = vadd.f32 %v481, %v576
        %578 = vmatmul.bf16.gmra.mxu0 %v502
        %v579 = vpop.f32.mrf.mxu0
        %v580 = vadd.f32 %v481, %v579
        %v581 = vpop.f32.mrf.mxu0
        %v582 = vadd.f32 %v481, %v581
        %583 = vdwg.mxu0
        %v584 = vmax.f32 %v565, 0.0
        %v585 = vmax.f32 %v567, 0.0
        %v586 = vmax.f32 %v570, 0.0
        %v587 = vmax.f32 %v572, 0.0
        %v588 = vmax.f32 %v575, 0.0
        %v589 = vmax.f32 %v577, 0.0
        %v590 = vmax.f32 %v580, 0.0
        %v591 = vmax.f32 %v582, 0.0
        %v592 = vpack.c.bf16 %v584, %v584
        %v593 = vpack.c.bf16 %v585, %v585
        %v594 = vpack.c.bf16 %v586, %v586
        %v595 = vpack.c.bf16 %v587, %v587
        %v596 = vpack.c.bf16 %v588, %v588
        %v597 = vpack.c.bf16 %v589, %v589
        %v598 = vpack.c.bf16 %v590, %v590
        %v599 = vpack.c.bf16 %v591, %v591
        %v600 = vld [vmem:[%s7] sm:$0xf]
        %v601 = vld [vmem:[%s7 + $0x4] sm:$0xf]
        %v604 = vunpack.c.l.b16 %v600
        %v605 = vunpack.c.l.b16 %v601
        %v606 = vpack.c.b16 %v605, %v604
        %vm607 = vcmask 64512
        %v609 = vsel %vm607, %v606, 0
        %vm611 = vcmask 1043456
        %v613 = vsel %vm611, %v592, 0
        %615 = vmatpush.bf16.msra.mxu0 0
        %616 = vmatpush.bf16.msra.mxu0 0
        %617 = vmatpush.bf16.msra.mxu0 0
        %618 = vmatpush.bf16.msra.mxu0 0
        %619 = vmatpush.bf16.msra.mxu0 0
        %620 = vmatpush.bf16.msra.mxu0 0
        %621 = vmatpush.bf16.msra.mxu0 0
        %622 = vmatpush.bf16.msra.mxu0 %v613
        %623 = vmatmul.bf16.gmra.mxu0 %v609
        %v624 = vpop.f32.mrf.mxu0
        %v625 = vadd.f32 0.0, %v624
        %v626 = vpop.f32.mrf.mxu0
        %v627 = vadd.f32 0.0, %v626
        %628 = vdwg.mxu0
        %v630 = vsel %vm611, %v593, 0
        %632 = vmatpush.bf16.msra.mxu0 0
        %633 = vmatpush.bf16.msra.mxu0 0
        %634 = vmatpush.bf16.msra.mxu0 0
        %635 = vmatpush.bf16.msra.mxu0 0
        %636 = vmatpush.bf16.msra.mxu0 0
        %637 = vmatpush.bf16.msra.mxu0 0
        %638 = vmatpush.bf16.msra.mxu0 0
        %639 = vmatpush.bf16.msra.mxu0 %v630
        %640 = vmatmul.bf16.gmra.mxu0 %v609
        %v641 = vpop.f32.mrf.mxu0
        %v642 = vadd.f32 0.0, %v641
        %v643 = vpop.f32.mrf.mxu0
        %v644 = vadd.f32 0.0, %v643
        %645 = vdwg.mxu0
        %v647 = vsel %vm611, %v594, 0
        %649 = vmatpush.bf16.msra.mxu0 0
        %650 = vmatpush.bf16.msra.mxu0 0
        %651 = vmatpush.bf16.msra.mxu0 0
        %652 = vmatpush.bf16.msra.mxu0 0
        %653 = vmatpush.bf16.msra.mxu0 0
        %654 = vmatpush.bf16.msra.mxu0 0
        %655 = vmatpush.bf16.msra.mxu0 0
        %656 = vmatpush.bf16.msra.mxu0 %v647
        %657 = vmatmul.bf16.gmra.mxu0 %v609
        %v658 = vpop.f32.mrf.mxu0
        %v659 = vadd.f32 0.0, %v658
        %v660 = vpop.f32.mrf.mxu0
        %v661 = vadd.f32 0.0, %v660
        %662 = vdwg.mxu0
        %v664 = vsel %vm611, %v595, 0
        %666 = vmatpush.bf16.msra.mxu0 0
        %667 = vmatpush.bf16.msra.mxu0 0
        %668 = vmatpush.bf16.msra.mxu0 0
        %669 = vmatpush.bf16.msra.mxu0 0
        %670 = vmatpush.bf16.msra.mxu0 0
        %671 = vmatpush.bf16.msra.mxu0 0
        %672 = vmatpush.bf16.msra.mxu0 0
        %673 = vmatpush.bf16.msra.mxu0 %v664
        %674 = vmatmul.bf16.gmra.mxu0 %v609
        %v675 = vpop.f32.mrf.mxu0
        %v676 = vadd.f32 0.0, %v675
        %v677 = vpop.f32.mrf.mxu0
        %v678 = vadd.f32 0.0, %v677
        %679 = vdwg.mxu0
        %v681 = vsel %vm611, %v596, 0
        %683 = vmatpush.bf16.msra.mxu0 0
        %684 = vmatpush.bf16.msra.mxu0 0
        %685 = vmatpush.bf16.msra.mxu0 0
        %686 = vmatpush.bf16.msra.mxu0 0
        %687 = vmatpush.bf16.msra.mxu0 0
        %688 = vmatpush.bf16.msra.mxu0 0
        %689 = vmatpush.bf16.msra.mxu0 0
        %690 = vmatpush.bf16.msra.mxu0 %v681
        %691 = vmatmul.bf16.gmra.mxu0 %v609
        %v692 = vpop.f32.mrf.mxu0
        %v693 = vadd.f32 0.0, %v692
        %v694 = vpop.f32.mrf.mxu0
        %v695 = vadd.f32 0.0, %v694
        %696 = vdwg.mxu0
        %v698 = vsel %vm611, %v597, 0
        %700 = vmatpush.bf16.msra.mxu0 0
        %701 = vmatpush.bf16.msra.mxu0 0
        %702 = vmatpush.bf16.msra.mxu0 0
        %703 = vmatpush.bf16.msra.mxu0 0
        %704 = vmatpush.bf16.msra.mxu0 0
        %705 = vmatpush.bf16.msra.mxu0 0
        %706 = vmatpush.bf16.msra.mxu0 0
        %707 = vmatpush.bf16.msra.mxu0 %v698
        %708 = vmatmul.bf16.gmra.mxu0 %v609
        %v709 = vpop.f32.mrf.mxu0
        %v710 = vadd.f32 0.0, %v709
        %v711 = vpop.f32.mrf.mxu0
        %v712 = vadd.f32 0.0, %v711
        %713 = vdwg.mxu0
        %v715 = vsel %vm611, %v598, 0
        %717 = vmatpush.bf16.msra.mxu0 0
        %718 = vmatpush.bf16.msra.mxu0 0
        %719 = vmatpush.bf16.msra.mxu0 0
        %720 = vmatpush.bf16.msra.mxu0 0
        %721 = vmatpush.bf16.msra.mxu0 0
        %722 = vmatpush.bf16.msra.mxu0 0
        %723 = vmatpush.bf16.msra.mxu0 0
        %724 = vmatpush.bf16.msra.mxu0 %v715
        %725 = vmatmul.bf16.gmra.mxu0 %v609
        %v726 = vpop.f32.mrf.mxu0
        %v727 = vadd.f32 0.0, %v726
        %v728 = vpop.f32.mrf.mxu0
        %v729 = vadd.f32 0.0, %v728
        %730 = vdwg.mxu0
        %v732 = vsel %vm611, %v599, 0
        %734 = vmatpush.bf16.msra.mxu0 0
        %735 = vmatpush.bf16.msra.mxu0 0
        %736 = vmatpush.bf16.msra.mxu0 0
        %737 = vmatpush.bf16.msra.mxu0 0
        %738 = vmatpush.bf16.msra.mxu0 0
        %739 = vmatpush.bf16.msra.mxu0 0
        %740 = vmatpush.bf16.msra.mxu0 0
        %741 = vmatpush.bf16.msra.mxu0 %v732
        %742 = vmatmul.bf16.gmra.mxu0 %v609
        %v743 = vpop.f32.mrf.mxu0
        %v744 = vadd.f32 0.0, %v743
        %v745 = vpop.f32.mrf.mxu0
        %v746 = vadd.f32 0.0, %v745
        %747 = vdwg.mxu0
        %v748 = vpack.c.bf16 %v625, %v625
        %v749 = vpack.c.bf16 %v627, %v627
        %v750 = vpack.c.bf16 %v642, %v642
        %v751 = vpack.c.bf16 %v644, %v644
        %v752 = vpack.c.bf16 %v659, %v659
        %v753 = vpack.c.bf16 %v661, %v661
        %v754 = vpack.c.bf16 %v676, %v676
        %v755 = vpack.c.bf16 %v678, %v678
        %v756 = vpack.c.bf16 %v693, %v693
        %v757 = vpack.c.bf16 %v695, %v695
        %v758 = vpack.c.bf16 %v710, %v710
        %v759 = vpack.c.bf16 %v712, %v712
        %v760 = vpack.c.bf16 %v727, %v727
        %v761 = vpack.c.bf16 %v729, %v729
        %v762 = vpack.c.bf16 %v744, %v744
        %v763 = vpack.c.bf16 %v746, %v746
        %v764 = vrot.slane %v756, 4
        %vm765 = vcmask 1047556
        %v766 = vsel %vm765, %v764, %v748
        %v768 = vunpack.c.l.s4 1983009808
        %v769 = vunpack.c.0.s8 %v768
        %v770 = vperm.slane %v766, %v769
        %v771 = vrot.slane %v760, 4
        %v772 = vsel %vm765, %v771, %v752
        %v774 = vunpack.c.l.s4 1983009808
        %v775 = vunpack.c.0.s8 %v774
        %v776 = vperm.slane %v772, %v775
        %v777 = vrot.slane %v776, 4
        %v778 = vsel %vm765, %v777, %v770
        %v779 = vrot.slane %v770, 4
        %v780 = vsel %vm765, %v776, %v779
        %v782 = vunpack.c.l.s4 1934713408
        %v783 = vunpack.c.0.s8 %v782
        %v784 = vperm.slane %v778, %v783
        %v786 = vunpack.c.l.s4 1934713408
        %v787 = vunpack.c.0.s8 %v786
        %v788 = vperm.slane %v780, %v787
        %v789 = vrot.slane %v784, 4
        %v790 = vsel %vm765, 0, %v789
        %v791 = vrot.slane %v788, 4
        %v792 = vsel %vm765, 0, %v791
        %v793 = vrot.slane %v758, 4
        %v794 = vsel %vm765, %v793, %v750
        %v796 = vunpack.c.l.s4 1983009808
        %v797 = vunpack.c.0.s8 %v796
        %v798 = vperm.slane %v794, %v797
        %v799 = vrot.slane %v762, 4
        %v800 = vsel %vm765, %v799, %v754
        %v802 = vunpack.c.l.s4 1983009808
        %v803 = vunpack.c.0.s8 %v802
        %v804 = vperm.slane %v800, %v803
        %v805 = vrot.slane %v804, 4
        %v806 = vsel %vm765, %v805, %v798
        %v807 = vrot.slane %v798, 4
        %v808 = vsel %vm765, %v804, %v807
        %v810 = vunpack.c.l.s4 1934713408
        %v811 = vunpack.c.0.s8 %v810
        %v812 = vperm.slane %v806, %v811
        %v814 = vunpack.c.l.s4 1934713408
        %v815 = vunpack.c.0.s8 %v814
        %v816 = vperm.slane %v808, %v815
        %v817 = vrot.slane %v812, 4
        %v818 = vsel %vm765, 0, %v817
        %v819 = vrot.slane %v816, 4
        %v820 = vsel %vm765, 0, %v819
        %v821 = vrot.slane %v757, 4
        %v822 = vsel %vm765, %v821, %v749
        %v824 = vunpack.c.l.s4 1983009808
        %v825 = vunpack.c.0.s8 %v824
        %v826 = vperm.slane %v822, %v825
        %v827 = vrot.slane %v761, 4
        %v828 = vsel %vm765, %v827, %v753
        %v830 = vunpack.c.l.s4 1983009808
        %v831 = vunpack.c.0.s8 %v830
        %v832 = vperm.slane %v828, %v831
        %v833 = vrot.slane %v832, 4
        %v834 = vsel %vm765, %v833, %v826
        %v835 = vrot.slane %v826, 4
        %v836 = vsel %vm765, %v832, %v835
        %v838 = vunpack.c.l.s4 1934713408
        %v839 = vunpack.c.0.s8 %v838
        %v840 = vperm.slane %v834, %v839
        %v842 = vunpack.c.l.s4 1934713408
        %v843 = vunpack.c.0.s8 %v842
        %v844 = vperm.slane %v836, %v843
        %v845 = vrot.slane %v840, 4
        %v846 = vsel %vm765, 0, %v845
        %v847 = vrot.slane %v844, 4
        %v848 = vsel %vm765, 0, %v847
        %v849 = vrot.slane %v759, 4
        %v850 = vsel %vm765, %v849, %v751
        %v852 = vunpack.c.l.s4 1983009808
        %v853 = vunpack.c.0.s8 %v852
        %v854 = vperm.slane %v850, %v853
        %v855 = vrot.slane %v763, 4
        %v856 = vsel %vm765, %v855, %v755
        %v858 = vunpack.c.l.s4 1983009808
        %v859 = vunpack.c.0.s8 %v858
        %v860 = vperm.slane %v856, %v859
        %v861 = vrot.slane %v860, 4
        %v862 = vsel %vm765, %v861, %v854
        %v863 = vrot.slane %v854, 4
        %v864 = vsel %vm765, %v860, %v863
        %v866 = vunpack.c.l.s4 1934713408
        %v867 = vunpack.c.0.s8 %v866
        %v868 = vperm.slane %v862, %v867
        %v870 = vunpack.c.l.s4 1934713408
        %v871 = vunpack.c.0.s8 %v870
        %v872 = vperm.slane %v864, %v871
        %v873 = vrot.slane %v868, 4
        %v874 = vsel %vm765, 0, %v873
        %v875 = vrot.slane %v872, 4
        %v876 = vsel %vm765, 0, %v875
        %v879 = vpack.i.b16 %v812, %v784
        %v880 = vshrl.u32 %v784, 16
        %v881 = vshrl.u32 %v812, 16
        %v882 = vpack.i.b16 %v881, %v880
        %v885 = vpack.i.b16 %v818, %v790
        %v886 = vshrl.u32 %v790, 16
        %v887 = vshrl.u32 %v818, 16
        %v888 = vpack.i.b16 %v887, %v886
        %v891 = vpack.i.b16 %v816, %v788
        %v892 = vshrl.u32 %v788, 16
        %v893 = vshrl.u32 %v816, 16
        %v894 = vpack.i.b16 %v893, %v892
        %v897 = vpack.i.b16 %v820, %v792
        %v898 = vshrl.u32 %v792, 16
        %v899 = vshrl.u32 %v820, 16
        %v900 = vpack.i.b16 %v899, %v898
        %v903 = vpack.i.b16 %v868, %v840
        %v904 = vshrl.u32 %v840, 16
        %v905 = vshrl.u32 %v868, 16
        %v906 = vpack.i.b16 %v905, %v904
        %v909 = vpack.i.b16 %v874, %v846
        %v910 = vshrl.u32 %v846, 16
        %v911 = vshrl.u32 %v874, 16
        %v912 = vpack.i.b16 %v911, %v910
        %v915 = vpack.i.b16 %v872, %v844
        %v916 = vshrl.u32 %v844, 16
        %v917 = vshrl.u32 %v872, 16
        %v918 = vpack.i.b16 %v917, %v916
        %v921 = vpack.i.b16 %v876, %v848
        %v922 = vshrl.u32 %v848, 16
        %v923 = vshrl.u32 %v876, 16
        %v924 = vpack.i.b16 %v923, %v922
        %v925 = vld [vmem:[%s6] sm:$0xf]
        %v926 = vld [vmem:[%s6 + $0x4] sm:$0xf]
        %v929 = vunpack.c.l.b16 %v925
        %v930 = vunpack.c.l.b16 %v926
        %v931 = vpack.c.b16 %v930, %v929
        %v933 = vsel %vm607, %v931, 0
        %v936 = vsel %vm611, %v879, 0
        %v939 = vsel %vm611, %v882, 0
        %v942 = vsel %vm611, %v885, 0
        %v945 = vsel %vm611, %v888, 0
        %v948 = vsel %vm611, %v891, 0
        %v951 = vsel %vm611, %v894, 0
        %v954 = vsel %vm611, %v897, 0
        %v957 = vsel %vm611, %v900, 0
        %v960 = vsel %vm611, %v903, 0
        %v963 = vsel %vm611, %v906, 0
        %v966 = vsel %vm611, %v909, 0
        %v969 = vsel %vm611, %v912, 0
        %v972 = vsel %vm611, %v915, 0
        %v975 = vsel %vm611, %v918, 0
        %v978 = vsel %vm611, %v921, 0
        %v981 = vsel %vm611, %v924, 0
        %983 = vmatpush.bf16.msra.mxu0 0
        %984 = vmatpush.bf16.msra.mxu0 0
        %985 = vmatpush.bf16.msra.mxu0 0
        %986 = vmatpush.bf16.msra.mxu0 0
        %987 = vmatpush.bf16.msra.mxu0 0
        %988 = vmatpush.bf16.msra.mxu0 0
        %989 = vmatpush.bf16.msra.mxu0 0
        %990 = vmatpush.bf16.msra.mxu0 %v936
        %991 = vmatmul.bf16.gmra.mxu0 %v933
        %v992 = vpop.f32.mrf.mxu0
        %v993 = vadd.f32 0.0, %v992
        %v994 = vpop.f32.mrf.mxu0
        %v995 = vadd.f32 0.0, %v994
        %996 = vdwg.mxu0
        %997 = vmatpush.bf16.msra.mxu0 0
        %998 = vmatpush.bf16.msra.mxu0 0
        %999 = vmatpush.bf16.msra.mxu0 0
        %1000 = vmatpush.bf16.msra.mxu0 0
        %1001 = vmatpush.bf16.msra.mxu0 0
        %1002 = vmatpush.bf16.msra.mxu0 0
        %1003 = vmatpush.bf16.msra.mxu0 0
        %1004 = vmatpush.bf16.msra.mxu0 %v939
        %1005 = vmatmul.bf16.gmra.mxu0 %v933
        %v1006 = vpop.f32.mrf.mxu0
        %v1007 = vadd.f32 0.0, %v1006
        %v1008 = vpop.f32.mrf.mxu0
        %v1009 = vadd.f32 0.0, %v1008
        %1010 = vdwg.mxu0
        %1011 = vmatpush.bf16.msra.mxu0 0
        %1012 = vmatpush.bf16.msra.mxu0 0
        %1013 = vmatpush.bf16.msra.mxu0 0
        %1014 = vmatpush.bf16.msra.mxu0 0
        %1015 = vmatpush.bf16.msra.mxu0 0
        %1016 = vmatpush.bf16.msra.mxu0 0
        %1017 = vmatpush.bf16.msra.mxu0 0
        %1018 = vmatpush.bf16.msra.mxu0 %v942
        %1019 = vmatmul.bf16.gmra.mxu0 %v933
        %v1020 = vpop.f32.mrf.mxu0
        %v1021 = vadd.f32 0.0, %v1020
        %v1022 = vpop.f32.mrf.mxu0
        %v1023 = vadd.f32 0.0, %v1022
        %1024 = vdwg.mxu0
        %1025 = vmatpush.bf16.msra.mxu0 0
        %1026 = vmatpush.bf16.msra.mxu0 0
        %1027 = vmatpush.bf16.msra.mxu0 0
        %1028 = vmatpush.bf16.msra.mxu0 0
        %1029 = vmatpush.bf16.msra.mxu0 0
        %1030 = vmatpush.bf16.msra.mxu0 0
        %1031 = vmatpush.bf16.msra.mxu0 0
        %1032 = vmatpush.bf16.msra.mxu0 %v945
        %1033 = vmatmul.bf16.gmra.mxu0 %v933
        %v1034 = vpop.f32.mrf.mxu0
        %v1035 = vadd.f32 0.0, %v1034
        %v1036 = vpop.f32.mrf.mxu0
        %v1037 = vadd.f32 0.0, %v1036
        %1038 = vdwg.mxu0
        %1039 = vmatpush.bf16.msra.mxu0 0
        %1040 = vmatpush.bf16.msra.mxu0 0
        %1041 = vmatpush.bf16.msra.mxu0 0
        %1042 = vmatpush.bf16.msra.mxu0 0
        %1043 = vmatpush.bf16.msra.mxu0 0
        %1044 = vmatpush.bf16.msra.mxu0 0
        %1045 = vmatpush.bf16.msra.mxu0 0
        %1046 = vmatpush.bf16.msra.mxu0 %v948
        %1047 = vmatmul.bf16.gmra.mxu0 %v933
        %v1048 = vpop.f32.mrf.mxu0
        %v1049 = vadd.f32 0.0, %v1048
        %v1050 = vpop.f32.mrf.mxu0
        %v1051 = vadd.f32 0.0, %v1050
        %1052 = vdwg.mxu0
        %1053 = vmatpush.bf16.msra.mxu0 0
        %1054 = vmatpush.bf16.msra.mxu0 0
        %1055 = vmatpush.bf16.msra.mxu0 0
        %1056 = vmatpush.bf16.msra.mxu0 0
        %1057 = vmatpush.bf16.msra.mxu0 0
        %1058 = vmatpush.bf16.msra.mxu0 0
        %1059 = vmatpush.bf16.msra.mxu0 0
        %1060 = vmatpush.bf16.msra.mxu0 %v951
        %1061 = vmatmul.bf16.gmra.mxu0 %v933
        %v1062 = vpop.f32.mrf.mxu0
        %v1063 = vadd.f32 0.0, %v1062
        %v1064 = vpop.f32.mrf.mxu0
        %v1065 = vadd.f32 0.0, %v1064
        %1066 = vdwg.mxu0
        %1067 = vmatpush.bf16.msra.mxu0 0
        %1068 = vmatpush.bf16.msra.mxu0 0
        %1069 = vmatpush.bf16.msra.mxu0 0
        %1070 = vmatpush.bf16.msra.mxu0 0
        %1071 = vmatpush.bf16.msra.mxu0 0
        %1072 = vmatpush.bf16.msra.mxu0 0
        %1073 = vmatpush.bf16.msra.mxu0 0
        %1074 = vmatpush.bf16.msra.mxu0 %v954
        %1075 = vmatmul.bf16.gmra.mxu0 %v933
        %v1076 = vpop.f32.mrf.mxu0
        %v1077 = vadd.f32 0.0, %v1076
        %v1078 = vpop.f32.mrf.mxu0
        %v1079 = vadd.f32 0.0, %v1078
        %1080 = vdwg.mxu0
        %1081 = vmatpush.bf16.msra.mxu0 0
        %1082 = vmatpush.bf16.msra.mxu0 0
        %1083 = vmatpush.bf16.msra.mxu0 0
        %1084 = vmatpush.bf16.msra.mxu0 0
        %1085 = vmatpush.bf16.msra.mxu0 0
        %1086 = vmatpush.bf16.msra.mxu0 0
        %1087 = vmatpush.bf16.msra.mxu0 0
        %1088 = vmatpush.bf16.msra.mxu0 %v957
        %1089 = vmatmul.bf16.gmra.mxu0 %v933
        %v1090 = vpop.f32.mrf.mxu0
        %v1091 = vadd.f32 0.0, %v1090
        %v1092 = vpop.f32.mrf.mxu0
        %v1093 = vadd.f32 0.0, %v1092
        %1094 = vdwg.mxu0
        %1095 = vmatpush.bf16.msra.mxu0 0
        %1096 = vmatpush.bf16.msra.mxu0 0
        %1097 = vmatpush.bf16.msra.mxu0 0
        %1098 = vmatpush.bf16.msra.mxu0 0
        %1099 = vmatpush.bf16.msra.mxu0 0
        %1100 = vmatpush.bf16.msra.mxu0 0
        %1101 = vmatpush.bf16.msra.mxu0 0
        %1102 = vmatpush.bf16.msra.mxu0 %v960
        %1103 = vmatmul.bf16.gmra.mxu0 %v933
        %v1104 = vpop.f32.mrf.mxu0
        %v1105 = vadd.f32 0.0, %v1104
        %v1106 = vpop.f32.mrf.mxu0
        %v1107 = vadd.f32 0.0, %v1106
        %1108 = vdwg.mxu0
        %1109 = vmatpush.bf16.msra.mxu0 0
        %1110 = vmatpush.bf16.msra.mxu0 0
        %1111 = vmatpush.bf16.msra.mxu0 0
        %1112 = vmatpush.bf16.msra.mxu0 0
        %1113 = vmatpush.bf16.msra.mxu0 0
        %1114 = vmatpush.bf16.msra.mxu0 0
        %1115 = vmatpush.bf16.msra.mxu0 0
        %1116 = vmatpush.bf16.msra.mxu0 %v963
        %1117 = vmatmul.bf16.gmra.mxu0 %v933
        %v1118 = vpop.f32.mrf.mxu0
        %v1119 = vadd.f32 0.0, %v1118
        %v1120 = vpop.f32.mrf.mxu0
        %v1121 = vadd.f32 0.0, %v1120
        %1122 = vdwg.mxu0
        %1123 = vmatpush.bf16.msra.mxu0 0
        %1124 = vmatpush.bf16.msra.mxu0 0
        %1125 = vmatpush.bf16.msra.mxu0 0
        %1126 = vmatpush.bf16.msra.mxu0 0
        %1127 = vmatpush.bf16.msra.mxu0 0
        %1128 = vmatpush.bf16.msra.mxu0 0
        %1129 = vmatpush.bf16.msra.mxu0 0
        %1130 = vmatpush.bf16.msra.mxu0 %v966
        %1131 = vmatmul.bf16.gmra.mxu0 %v933
        %v1132 = vpop.f32.mrf.mxu0
        %v1133 = vadd.f32 0.0, %v1132
        %v1134 = vpop.f32.mrf.mxu0
        %v1135 = vadd.f32 0.0, %v1134
        %1136 = vdwg.mxu0
        %1137 = vmatpush.bf16.msra.mxu0 0
        %1138 = vmatpush.bf16.msra.mxu0 0
        %1139 = vmatpush.bf16.msra.mxu0 0
        %1140 = vmatpush.bf16.msra.mxu0 0
        %1141 = vmatpush.bf16.msra.mxu0 0
        %1142 = vmatpush.bf16.msra.mxu0 0
        %1143 = vmatpush.bf16.msra.mxu0 0
        %1144 = vmatpush.bf16.msra.mxu0 %v969
        %1145 = vmatmul.bf16.gmra.mxu0 %v933
        %v1146 = vpop.f32.mrf.mxu0
        %v1147 = vadd.f32 0.0, %v1146
        %v1148 = vpop.f32.mrf.mxu0
        %v1149 = vadd.f32 0.0, %v1148
        %1150 = vdwg.mxu0
        %1151 = vmatpush.bf16.msra.mxu0 0
        %1152 = vmatpush.bf16.msra.mxu0 0
        %1153 = vmatpush.bf16.msra.mxu0 0
        %1154 = vmatpush.bf16.msra.mxu0 0
        %1155 = vmatpush.bf16.msra.mxu0 0
        %1156 = vmatpush.bf16.msra.mxu0 0
        %1157 = vmatpush.bf16.msra.mxu0 0
        %1158 = vmatpush.bf16.msra.mxu0 %v972
        %1159 = vmatmul.bf16.gmra.mxu0 %v933
        %v1160 = vpop.f32.mrf.mxu0
        %v1161 = vadd.f32 0.0, %v1160
        %v1162 = vpop.f32.mrf.mxu0
        %v1163 = vadd.f32 0.0, %v1162
        %1164 = vdwg.mxu0
        %1165 = vmatpush.bf16.msra.mxu0 0
        %1166 = vmatpush.bf16.msra.mxu0 0
        %1167 = vmatpush.bf16.msra.mxu0 0
        %1168 = vmatpush.bf16.msra.mxu0 0
        %1169 = vmatpush.bf16.msra.mxu0 0
        %1170 = vmatpush.bf16.msra.mxu0 0
        %1171 = vmatpush.bf16.msra.mxu0 0
        %1172 = vmatpush.bf16.msra.mxu0 %v975
        %1173 = vmatmul.bf16.gmra.mxu0 %v933
        %v1174 = vpop.f32.mrf.mxu0
        %v1175 = vadd.f32 0.0, %v1174
        %v1176 = vpop.f32.mrf.mxu0
        %v1177 = vadd.f32 0.0, %v1176
        %1178 = vdwg.mxu0
        %1179 = vmatpush.bf16.msra.mxu0 0
        %1180 = vmatpush.bf16.msra.mxu0 0
        %1181 = vmatpush.bf16.msra.mxu0 0
        %1182 = vmatpush.bf16.msra.mxu0 0
        %1183 = vmatpush.bf16.msra.mxu0 0
        %1184 = vmatpush.bf16.msra.mxu0 0
        %1185 = vmatpush.bf16.msra.mxu0 0
        %1186 = vmatpush.bf16.msra.mxu0 %v978
        %1187 = vmatmul.bf16.gmra.mxu0 %v933
        %v1188 = vpop.f32.mrf.mxu0
        %v1189 = vadd.f32 0.0, %v1188
        %v1190 = vpop.f32.mrf.mxu0
        %v1191 = vadd.f32 0.0, %v1190
        %1192 = vdwg.mxu0
        %1193 = vmatpush.bf16.msra.mxu0 0
        %1194 = vmatpush.bf16.msra.mxu0 0
        %1195 = vmatpush.bf16.msra.mxu0 0
        %1196 = vmatpush.bf16.msra.mxu0 0
        %1197 = vmatpush.bf16.msra.mxu0 0
        %1198 = vmatpush.bf16.msra.mxu0 0
        %1199 = vmatpush.bf16.msra.mxu0 0
        %1200 = vmatpush.bf16.msra.mxu0 %v981
        %1201 = vmatmul.bf16.gmra.mxu0 %v933
        %v1202 = vpop.f32.mrf.mxu0
        %v1203 = vadd.f32 0.0, %v1202
        %v1204 = vpop.f32.mrf.mxu0
        %v1205 = vadd.f32 0.0, %v1204
        %1206 = vdwg.mxu0
        %v1207 = vrot.slane %v1021, 4
        %vm1208 = vcmask 1047556
        %v1209 = vsel %vm1208, %v1207, %v993
        %v1210 = vrot.slane %v993, 4
        %v1211 = vsel %vm1208, %v1021, %v1210
        %v1213 = vunpack.c.l.s4 1983009808
        %v1214 = vunpack.c.0.s8 %v1213
        %v1215 = vperm.slane %v1209, %v1214
        %v1217 = vunpack.c.l.s4 1983009808
        %v1218 = vunpack.c.0.s8 %v1217
        %v1219 = vperm.slane %v1211, %v1218
        %v1220 = vrot.slane %v1035, 4
        %v1221 = vsel %vm1208, %v1220, %v1007
        %v1222 = vrot.slane %v1007, 4
        %v1223 = vsel %vm1208, %v1035, %v1222
        %v1225 = vunpack.c.l.s4 1983009808
        %v1226 = vunpack.c.0.s8 %v1225
        %v1227 = vperm.slane %v1221, %v1226
        %v1229 = vunpack.c.l.s4 1983009808
        %v1230 = vunpack.c.0.s8 %v1229
        %v1231 = vperm.slane %v1223, %v1230
        %v1232 = vrot.slane %v1077, 4
        %v1233 = vsel %vm1208, %v1232, %v1049
        %v1234 = vrot.slane %v1049, 4
        %v1235 = vsel %vm1208, %v1077, %v1234
        %v1237 = vunpack.c.l.s4 1983009808
        %v1238 = vunpack.c.0.s8 %v1237
        %v1239 = vperm.slane %v1233, %v1238
        %v1241 = vunpack.c.l.s4 1983009808
        %v1242 = vunpack.c.0.s8 %v1241
        %v1243 = vperm.slane %v1235, %v1242
        %v1244 = vrot.slane %v1091, 4
        %v1245 = vsel %vm1208, %v1244, %v1063
        %v1246 = vrot.slane %v1063, 4
        %v1247 = vsel %vm1208, %v1091, %v1246
        %v1249 = vunpack.c.l.s4 1983009808
        %v1250 = vunpack.c.0.s8 %v1249
        %v1251 = vperm.slane %v1245, %v1250
        %v1253 = vunpack.c.l.s4 1983009808
        %v1254 = vunpack.c.0.s8 %v1253
        %v1255 = vperm.slane %v1247, %v1254
        %v1256 = vrot.slane %v1227, 4
        %v1257 = vsel %vm1208, %v1256, %v1215
        %v1258 = vrot.slane %v1215, 4
        %v1259 = vsel %vm1208, %v1227, %v1258
        %v1261 = vunpack.c.l.s4 1934713408
        %v1262 = vunpack.c.0.s8 %v1261
        %v1263 = vperm.slane %v1257, %v1262
        %v1265 = vunpack.c.l.s4 1934713408
        %v1266 = vunpack.c.0.s8 %v1265
        %v1267 = vperm.slane %v1259, %v1266
        %v1268 = vrot.slane %v1231, 4
        %v1269 = vsel %vm1208, %v1268, %v1219
        %v1270 = vrot.slane %v1219, 4
        %v1271 = vsel %vm1208, %v1231, %v1270
        %v1273 = vunpack.c.l.s4 1934713408
        %v1274 = vunpack.c.0.s8 %v1273
        %v1275 = vperm.slane %v1269, %v1274
        %v1277 = vunpack.c.l.s4 1934713408
        %v1278 = vunpack.c.0.s8 %v1277
        %v1279 = vperm.slane %v1271, %v1278
        %v1280 = vrot.slane %v1251, 4
        %v1281 = vsel %vm1208, %v1280, %v1239
        %v1282 = vrot.slane %v1239, 4
        %v1283 = vsel %vm1208, %v1251, %v1282
        %v1285 = vunpack.c.l.s4 1934713408
        %v1286 = vunpack.c.0.s8 %v1285
        %v1287 = vperm.slane %v1281, %v1286
        %v1289 = vunpack.c.l.s4 1934713408
        %v1290 = vunpack.c.0.s8 %v1289
        %v1291 = vperm.slane %v1283, %v1290
        %v1292 = vrot.slane %v1255, 4
        %v1293 = vsel %vm1208, %v1292, %v1243
        %v1294 = vrot.slane %v1243, 4
        %v1295 = vsel %vm1208, %v1255, %v1294
        %v1297 = vunpack.c.l.s4 1934713408
        %v1298 = vunpack.c.0.s8 %v1297
        %v1299 = vperm.slane %v1293, %v1298
        %v1301 = vunpack.c.l.s4 1934713408
        %v1302 = vunpack.c.0.s8 %v1301
        %v1303 = vperm.slane %v1295, %v1302
        %v1304 = vrot.slane %v1287, 4
        %v1305 = vsel %vm1208, %v1304, %v1263
        %v1306 = vrot.slane %v1263, 4
        %v1307 = vsel %vm1208, %v1287, %v1306
        %v1308 = vrot.slane %v1291, 4
        %v1309 = vsel %vm1208, %v1308, %v1267
        %v1310 = vrot.slane %v1267, 4
        %v1311 = vsel %vm1208, %v1291, %v1310
        %v1312 = vrot.slane %v1299, 4
        %v1313 = vsel %vm1208, %v1312, %v1275
        %v1314 = vrot.slane %v1275, 4
        %v1315 = vsel %vm1208, %v1299, %v1314
        %v1316 = vrot.slane %v1303, 4
        %v1317 = vsel %vm1208, %v1316, %v1279
        %v1318 = vrot.slane %v1279, 4
        %v1319 = vsel %vm1208, %v1303, %v1318
        %v1320 = vrot.slane %v1133, 4
        %v1321 = vsel %vm1208, %v1320, %v1105
        %v1322 = vrot.slane %v1105, 4
        %v1323 = vsel %vm1208, %v1133, %v1322
        %v1325 = vunpack.c.l.s4 1983009808
        %v1326 = vunpack.c.0.s8 %v1325
        %v1327 = vperm.slane %v1321, %v1326
        %v1329 = vunpack.c.l.s4 1983009808
        %v1330 = vunpack.c.0.s8 %v1329
        %v1331 = vperm.slane %v1323, %v1330
        %v1332 = vrot.slane %v1147, 4
        %v1333 = vsel %vm1208, %v1332, %v1119
        %v1334 = vrot.slane %v1119, 4
        %v1335 = vsel %vm1208, %v1147, %v1334
        %v1337 = vunpack.c.l.s4 1983009808
        %v1338 = vunpack.c.0.s8 %v1337
        %v1339 = vperm.slane %v1333, %v1338
        %v1341 = vunpack.c.l.s4 1983009808
        %v1342 = vunpack.c.0.s8 %v1341
        %v1343 = vperm.slane %v1335, %v1342
        %v1344 = vrot.slane %v1189, 4
        %v1345 = vsel %vm1208, %v1344, %v1161
        %v1346 = vrot.slane %v1161, 4
        %v1347 = vsel %vm1208, %v1189, %v1346
        %v1349 = vunpack.c.l.s4 1983009808
        %v1350 = vunpack.c.0.s8 %v1349
        %v1351 = vperm.slane %v1345, %v1350
        %v1353 = vunpack.c.l.s4 1983009808
        %v1354 = vunpack.c.0.s8 %v1353
        %v1355 = vperm.slane %v1347, %v1354
        %v1356 = vrot.slane %v1203, 4
        %v1357 = vsel %vm1208, %v1356, %v1175
        %v1358 = vrot.slane %v1175, 4
        %v1359 = vsel %vm1208, %v1203, %v1358
        %v1361 = vunpack.c.l.s4 1983009808
        %v1362 = vunpack.c.0.s8 %v1361
        %v1363 = vperm.slane %v1357, %v1362
        %v1365 = vunpack.c.l.s4 1983009808
        %v1366 = vunpack.c.0.s8 %v1365
        %v1367 = vperm.slane %v1359, %v1366
        %v1368 = vrot.slane %v1339, 4
        %v1369 = vsel %vm1208, %v1368, %v1327
        %v1370 = vrot.slane %v1327, 4
        %v1371 = vsel %vm1208, %v1339, %v1370
        %v1373 = vunpack.c.l.s4 1934713408
        %v1374 = vunpack.c.0.s8 %v1373
        %v1375 = vperm.slane %v1369, %v1374
        %v1377 = vunpack.c.l.s4 1934713408
        %v1378 = vunpack.c.0.s8 %v1377
        %v1379 = vperm.slane %v1371, %v1378
        %v1380 = vrot.slane %v1343, 4
        %v1381 = vsel %vm1208, %v1380, %v1331
        %v1382 = vrot.slane %v1331, 4
        %v1383 = vsel %vm1208, %v1343, %v1382
        %v1385 = vunpack.c.l.s4 1934713408
        %v1386 = vunpack.c.0.s8 %v1385
        %v1387 = vperm.slane %v1381, %v1386
        %v1389 = vunpack.c.l.s4 1934713408
        %v1390 = vunpack.c.0.s8 %v1389
        %v1391 = vperm.slane %v1383, %v1390
        %v1392 = vrot.slane %v1363, 4
        %v1393 = vsel %vm1208, %v1392, %v1351
        %v1394 = vrot.slane %v1351, 4
        %v1395 = vsel %vm1208, %v1363, %v1394
        %v1397 = vunpack.c.l.s4 1934713408
        %v1398 = vunpack.c.0.s8 %v1397
        %v1399 = vperm.slane %v1393, %v1398
        %v1401 = vunpack.c.l.s4 1934713408
        %v1402 = vunpack.c.0.s8 %v1401
        %v1403 = vperm.slane %v1395, %v1402
        %v1404 = vrot.slane %v1367, 4
        %v1405 = vsel %vm1208, %v1404, %v1355
        %v1406 = vrot.slane %v1355, 4
        %v1407 = vsel %vm1208, %v1367, %v1406
        %v1409 = vunpack.c.l.s4 1934713408
        %v1410 = vunpack.c.0.s8 %v1409
        %v1411 = vperm.slane %v1405, %v1410
        %v1413 = vunpack.c.l.s4 1934713408
        %v1414 = vunpack.c.0.s8 %v1413
        %v1415 = vperm.slane %v1407, %v1414
        %v1416 = vrot.slane %v1399, 4
        %v1417 = vsel %vm1208, %v1416, %v1375
        %v1418 = vrot.slane %v1375, 4
        %v1419 = vsel %vm1208, %v1399, %v1418
        %v1420 = vrot.slane %v1403, 4
        %v1421 = vsel %vm1208, %v1420, %v1379
        %v1422 = vrot.slane %v1379, 4
        %v1423 = vsel %vm1208, %v1403, %v1422
        %v1424 = vrot.slane %v1411, 4
        %v1425 = vsel %vm1208, %v1424, %v1387
        %v1426 = vrot.slane %v1387, 4
        %v1427 = vsel %vm1208, %v1411, %v1426
        %v1428 = vrot.slane %v1415, 4
        %v1429 = vsel %vm1208, %v1428, %v1391
        %v1430 = vrot.slane %v1391, 4
        %v1431 = vsel %vm1208, %v1415, %v1430
        %v1432 = vrot.slane %v1023, 4
        %v1433 = vsel %vm1208, %v1432, %v995
        %v1434 = vrot.slane %v995, 4
        %v1435 = vsel %vm1208, %v1023, %v1434
        %v1437 = vunpack.c.l.s4 1983009808
        %v1438 = vunpack.c.0.s8 %v1437
        %v1439 = vperm.slane %v1433, %v1438
        %v1441 = vunpack.c.l.s4 1983009808
        %v1442 = vunpack.c.0.s8 %v1441
        %v1443 = vperm.slane %v1435, %v1442
        %v1444 = vrot.slane %v1037, 4
        %v1445 = vsel %vm1208, %v1444, %v1009
        %v1446 = vrot.slane %v1009, 4
        %v1447 = vsel %vm1208, %v1037, %v1446
        %v1449 = vunpack.c.l.s4 1983009808
        %v1450 = vunpack.c.0.s8 %v1449
        %v1451 = vperm.slane %v1445, %v1450
        %v1453 = vunpack.c.l.s4 1983009808
        %v1454 = vunpack.c.0.s8 %v1453
        %v1455 = vperm.slane %v1447, %v1454
        %v1456 = vrot.slane %v1079, 4
        %v1457 = vsel %vm1208, %v1456, %v1051
        %v1458 = vrot.slane %v1051, 4
        %v1459 = vsel %vm1208, %v1079, %v1458
        %v1461 = vunpack.c.l.s4 1983009808
        %v1462 = vunpack.c.0.s8 %v1461
        %v1463 = vperm.slane %v1457, %v1462
        %v1465 = vunpack.c.l.s4 1983009808
        %v1466 = vunpack.c.0.s8 %v1465
        %v1467 = vperm.slane %v1459, %v1466
        %v1468 = vrot.slane %v1093, 4
        %v1469 = vsel %vm1208, %v1468, %v1065
        %v1470 = vrot.slane %v1065, 4
        %v1471 = vsel %vm1208, %v1093, %v1470
        %v1473 = vunpack.c.l.s4 1983009808
        %v1474 = vunpack.c.0.s8 %v1473
        %v1475 = vperm.slane %v1469, %v1474
        %v1477 = vunpack.c.l.s4 1983009808
        %v1478 = vunpack.c.0.s8 %v1477
        %v1479 = vperm.slane %v1471, %v1478
        %v1480 = vrot.slane %v1451, 4
        %v1481 = vsel %vm1208, %v1480, %v1439
        %v1482 = vrot.slane %v1439, 4
        %v1483 = vsel %vm1208, %v1451, %v1482
        %v1485 = vunpack.c.l.s4 1934713408
        %v1486 = vunpack.c.0.s8 %v1485
        %v1487 = vperm.slane %v1481, %v1486
        %v1489 = vunpack.c.l.s4 1934713408
        %v1490 = vunpack.c.0.s8 %v1489
        %v1491 = vperm.slane %v1483, %v1490
        %v1492 = vrot.slane %v1455, 4
        %v1493 = vsel %vm1208, %v1492, %v1443
        %v1494 = vrot.slane %v1443, 4
        %v1495 = vsel %vm1208, %v1455, %v1494
        %v1497 = vunpack.c.l.s4 1934713408
        %v1498 = vunpack.c.0.s8 %v1497
        %v1499 = vperm.slane %v1493, %v1498
        %v1501 = vunpack.c.l.s4 1934713408
        %v1502 = vunpack.c.0.s8 %v1501
        %v1503 = vperm.slane %v1495, %v1502
        %v1504 = vrot.slane %v1475, 4
        %v1505 = vsel %vm1208, %v1504, %v1463
        %v1506 = vrot.slane %v1463, 4
        %v1507 = vsel %vm1208, %v1475, %v1506
        %v1509 = vunpack.c.l.s4 1934713408
        %v1510 = vunpack.c.0.s8 %v1509
        %v1511 = vperm.slane %v1505, %v1510
        %v1513 = vunpack.c.l.s4 1934713408
        %v1514 = vunpack.c.0.s8 %v1513
        %v1515 = vperm.slane %v1507, %v1514
        %v1516 = vrot.slane %v1479, 4
        %v1517 = vsel %vm1208, %v1516, %v1467
        %v1518 = vrot.slane %v1467, 4
        %v1519 = vsel %vm1208, %v1479, %v1518
        %v1521 = vunpack.c.l.s4 1934713408
        %v1522 = vunpack.c.0.s8 %v1521
        %v1523 = vperm.slane %v1517, %v1522
        %v1525 = vunpack.c.l.s4 1934713408
        %v1526 = vunpack.c.0.s8 %v1525
        %v1527 = vperm.slane %v1519, %v1526
        %v1528 = vrot.slane %v1511, 4
        %v1529 = vsel %vm1208, %v1528, %v1487
        %v1530 = vrot.slane %v1487, 4
        %v1531 = vsel %vm1208, %v1511, %v1530
        %v1532 = vrot.slane %v1515, 4
        %v1533 = vsel %vm1208, %v1532, %v1491
        %v1534 = vrot.slane %v1491, 4
        %v1535 = vsel %vm1208, %v1515, %v1534
        %v1536 = vrot.slane %v1523, 4
        %v1537 = vsel %vm1208, %v1536, %v1499
        %v1538 = vrot.slane %v1499, 4
        %v1539 = vsel %vm1208, %v1523, %v1538
        %v1540 = vrot.slane %v1527, 4
        %v1541 = vsel %vm1208, %v1540, %v1503
        %v1542 = vrot.slane %v1503, 4
        %v1543 = vsel %vm1208, %v1527, %v1542
        %v1544 = vrot.slane %v1135, 4
        %v1545 = vsel %vm1208, %v1544, %v1107
        %v1546 = vrot.slane %v1107, 4
        %v1547 = vsel %vm1208, %v1135, %v1546
        %v1549 = vunpack.c.l.s4 1983009808
        %v1550 = vunpack.c.0.s8 %v1549
        %v1551 = vperm.slane %v1545, %v1550
        %v1553 = vunpack.c.l.s4 1983009808
        %v1554 = vunpack.c.0.s8 %v1553
        %v1555 = vperm.slane %v1547, %v1554
        %v1556 = vrot.slane %v1149, 4
        %v1557 = vsel %vm1208, %v1556, %v1121
        %v1558 = vrot.slane %v1121, 4
        %v1559 = vsel %vm1208, %v1149, %v1558
        %v1561 = vunpack.c.l.s4 1983009808
        %v1562 = vunpack.c.0.s8 %v1561
        %v1563 = vperm.slane %v1557, %v1562
        %v1565 = vunpack.c.l.s4 1983009808
        %v1566 = vunpack.c.0.s8 %v1565
        %v1567 = vperm.slane %v1559, %v1566
        %v1568 = vrot.slane %v1191, 4
        %v1569 = vsel %vm1208, %v1568, %v1163
        %v1570 = vrot.slane %v1163, 4
        %v1571 = vsel %vm1208, %v1191, %v1570
        %v1573 = vunpack.c.l.s4 1983009808
        %v1574 = vunpack.c.0.s8 %v1573
        %v1575 = vperm.slane %v1569, %v1574
        %v1577 = vunpack.c.l.s4 1983009808
        %v1578 = vunpack.c.0.s8 %v1577
        %v1579 = vperm.slane %v1571, %v1578
        %v1580 = vrot.slane %v1205, 4
        %v1581 = vsel %vm1208, %v1580, %v1177
        %v1582 = vrot.slane %v1177, 4
        %v1583 = vsel %vm1208, %v1205, %v1582
        %v1585 = vunpack.c.l.s4 1983009808
        %v1586 = vunpack.c.0.s8 %v1585
        %v1587 = vperm.slane %v1581, %v1586
        %v1589 = vunpack.c.l.s4 1983009808
        %v1590 = vunpack.c.0.s8 %v1589
        %v1591 = vperm.slane %v1583, %v1590
        %v1592 = vrot.slane %v1563, 4
        %v1593 = vsel %vm1208, %v1592, %v1551
        %v1594 = vrot.slane %v1551, 4
        %v1595 = vsel %vm1208, %v1563, %v1594
        %v1597 = vunpack.c.l.s4 1934713408
        %v1598 = vunpack.c.0.s8 %v1597
        %v1599 = vperm.slane %v1593, %v1598
        %v1601 = vunpack.c.l.s4 1934713408
        %v1602 = vunpack.c.0.s8 %v1601
        %v1603 = vperm.slane %v1595, %v1602
        %v1604 = vrot.slane %v1567, 4
        %v1605 = vsel %vm1208, %v1604, %v1555
        %v1606 = vrot.slane %v1555, 4
        %v1607 = vsel %vm1208, %v1567, %v1606
        %v1609 = vunpack.c.l.s4 1934713408
        %v1610 = vunpack.c.0.s8 %v1609
        %v1611 = vperm.slane %v1605, %v1610
        %v1613 = vunpack.c.l.s4 1934713408
        %v1614 = vunpack.c.0.s8 %v1613
        %v1615 = vperm.slane %v1607, %v1614
        %v1616 = vrot.slane %v1587, 4
        %v1617 = vsel %vm1208, %v1616, %v1575
        %v1618 = vrot.slane %v1575, 4
        %v1619 = vsel %vm1208, %v1587, %v1618
        %v1621 = vunpack.c.l.s4 1934713408
        %v1622 = vunpack.c.0.s8 %v1621
        %v1623 = vperm.slane %v1617, %v1622
        %v1625 = vunpack.c.l.s4 1934713408
        %v1626 = vunpack.c.0.s8 %v1625
        %v1627 = vperm.slane %v1619, %v1626
        %v1628 = vrot.slane %v1591, 4
        %v1629 = vsel %vm1208, %v1628, %v1579
        %v1630 = vrot.slane %v1579, 4
        %v1631 = vsel %vm1208, %v1591, %v1630
        %v1633 = vunpack.c.l.s4 1934713408
        %v1634 = vunpack.c.0.s8 %v1633
        %v1635 = vperm.slane %v1629, %v1634
        %v1637 = vunpack.c.l.s4 1934713408
        %v1638 = vunpack.c.0.s8 %v1637
        %v1639 = vperm.slane %v1631, %v1638
        %v1640 = vrot.slane %v1623, 4
        %v1641 = vsel %vm1208, %v1640, %v1599
        %v1642 = vrot.slane %v1599, 4
        %v1643 = vsel %vm1208, %v1623, %v1642
        %v1644 = vrot.slane %v1627, 4
        %v1645 = vsel %vm1208, %v1644, %v1603
        %v1646 = vrot.slane %v1603, 4
        %v1647 = vsel %vm1208, %v1627, %v1646
        %v1648 = vrot.slane %v1635, 4
        %v1649 = vsel %vm1208, %v1648, %v1611
        %v1650 = vrot.slane %v1611, 4
        %v1651 = vsel %vm1208, %v1635, %v1650
        %v1652 = vrot.slane %v1639, 4
        %v1653 = vsel %vm1208, %v1652, %v1615
        %v1654 = vrot.slane %v1615, 4
        %v1655 = vsel %vm1208, %v1639, %v1654
        %v1656 = vld [vmem:[%s398] sm:$0xf]
        %v1657 = vld [vmem:[%s398 + $0x4] sm:$0xf]
        %v1658 = vld [vmem:[%s398 + $0x8] sm:$0xf]
        %v1659 = vld [vmem:[%s398 + $0xc] sm:$0xf]
        %v1660 = vld [vmem:[%s398 + $0x10] sm:$0xf]
        %v1661 = vld [vmem:[%s398 + $0x14] sm:$0xf]
        %v1662 = vld [vmem:[%s398 + $0x18] sm:$0xf]
        %v1663 = vld [vmem:[%s398 + $0x1c] sm:$0xf]
        %v1664 = vld [vmem:[%s398 + $0x20] sm:$0xf]
        %v1665 = vld [vmem:[%s398 + $0x24] sm:$0xf]
        %v1666 = vld [vmem:[%s398 + $0x28] sm:$0xf]
        %v1667 = vld [vmem:[%s398 + $0x2c] sm:$0xf]
        %v1668 = vld [vmem:[%s398 + $0x30] sm:$0xf]
        %v1669 = vld [vmem:[%s398 + $0x34] sm:$0xf]
        %v1670 = vld [vmem:[%s398 + $0x38] sm:$0xf]
        %v1671 = vld [vmem:[%s398 + $0x3c] sm:$0xf]
        %v1672 = vld [vmem:[%s398 + $0x40] sm:$0xf]
        %v1673 = vld [vmem:[%s398 + $0x44] sm:$0xf]
        %v1674 = vld [vmem:[%s398 + $0x48] sm:$0xf]
        %v1675 = vld [vmem:[%s398 + $0x4c] sm:$0xf]
        %v1676 = vld [vmem:[%s398 + $0x50] sm:$0xf]
        %v1677 = vld [vmem:[%s398 + $0x54] sm:$0xf]
        %v1678 = vld [vmem:[%s398 + $0x58] sm:$0xf]
        %v1679 = vld [vmem:[%s398 + $0x5c] sm:$0xf]
        %v1680 = vld [vmem:[%s398 + $0x60] sm:$0xf]
        %v1681 = vld [vmem:[%s398 + $0x64] sm:$0xf]
        %v1682 = vld [vmem:[%s398 + $0x68] sm:$0xf]
        %v1683 = vld [vmem:[%s398 + $0x6c] sm:$0xf]
        %v1684 = vld [vmem:[%s398 + $0x70] sm:$0xf]
        %v1685 = vld [vmem:[%s398 + $0x74] sm:$0xf]
        %v1686 = vld [vmem:[%s398 + $0x78] sm:$0xf]
        %v1687 = vld [vmem:[%s398 + $0x7c] sm:$0xf]
        %v1688 = vld [vmem:[#allocation8] sm:$0xf]
        %v1689 = vld [vmem:[#allocation8 + $0x4] sm:$0xf]
        %v1690 = vld [vmem:[#allocation8 + $0x8] sm:$0xf]
        %v1691 = vld [vmem:[#allocation8 + $0xc] sm:$0xf]
        %v1692 = vld [vmem:[#allocation8 + $0x10] sm:$0xf]
        %v1693 = vld [vmem:[#allocation8 + $0x14] sm:$0xf]
        %v1694 = vld [vmem:[#allocation8 + $0x18] sm:$0xf]
        %v1695 = vld [vmem:[#allocation8 + $0x1c] sm:$0xf]
        %v1696 = vld [vmem:[#allocation8 + $0x20] sm:$0xf]
        %v1697 = vld [vmem:[#allocation8 + $0x24] sm:$0xf]
        %v1698 = vld [vmem:[#allocation8 + $0x28] sm:$0xf]
        %v1699 = vld [vmem:[#allocation8 + $0x2c] sm:$0xf]
        %v1700 = vld [vmem:[#allocation8 + $0x30] sm:$0xf]
        %v1701 = vld [vmem:[#allocation8 + $0x34] sm:$0xf]
        %v1702 = vld [vmem:[#allocation8 + $0x38] sm:$0xf]
        %v1703 = vld [vmem:[#allocation8 + $0x3c] sm:$0xf]
        %v1704 = vld [vmem:[%s453] sm:$0x1]
        %v1706 = vperm.slane %v1704, 0
        %v1740 = vunpack.c.l.b16 %v1656
        %v1741 = vunpack.c.l.b16 %v1657
        %v1742 = vunpack.c.l.b16 %v1658
        %v1743 = vunpack.c.l.b16 %v1659
        %v1744 = vunpack.c.l.b16 %v1660
        %v1745 = vunpack.c.l.b16 %v1661
        %v1746 = vunpack.c.l.b16 %v1662
        %v1747 = vunpack.c.l.b16 %v1663
        %v1748 = vunpack.c.l.b16 %v1664
        %v1749 = vunpack.c.l.b16 %v1665
        %v1750 = vunpack.c.l.b16 %v1666
        %v1751 = vunpack.c.l.b16 %v1667
        %v1752 = vunpack.c.l.b16 %v1668
        %v1753 = vunpack.c.l.b16 %v1669
        %v1754 = vunpack.c.l.b16 %v1670
        %v1755 = vunpack.c.l.b16 %v1671
        %v1756 = vunpack.c.l.b16 %v1672
        %v1757 = vunpack.c.l.b16 %v1673
        %v1758 = vunpack.c.l.b16 %v1674
        %v1759 = vunpack.c.l.b16 %v1675
        %v1760 = vunpack.c.l.b16 %v1676
        %v1761 = vunpack.c.l.b16 %v1677
        %v1762 = vunpack.c.l.b16 %v1678
        %v1763 = vunpack.c.l.b16 %v1679
        %v1764 = vunpack.c.l.b16 %v1680
        %v1765 = vunpack.c.l.b16 %v1681
        %v1766 = vunpack.c.l.b16 %v1682
        %v1767 = vunpack.c.l.b16 %v1683
        %v1768 = vunpack.c.l.b16 %v1684
        %v1769 = vunpack.c.l.b16 %v1685
        %v1770 = vunpack.c.l.b16 %v1686
        %v1771 = vunpack.c.l.b16 %v1687
        %v1772 = vpack.c.b16 %v1741, %v1740
        %v1773 = vpack.c.b16 %v1743, %v1742
        %v1774 = vpack.c.b16 %v1745, %v1744
        %v1775 = vpack.c.b16 %v1747, %v1746
        %v1776 = vpack.c.b16 %v1749, %v1748
        %v1777 = vpack.c.b16 %v1751, %v1750
        %v1778 = vpack.c.b16 %v1753, %v1752
        %v1779 = vpack.c.b16 %v1755, %v1754
        %v1780 = vpack.c.b16 %v1757, %v1756
        %v1781 = vpack.c.b16 %v1759, %v1758
        %v1782 = vpack.c.b16 %v1761, %v1760
        %v1783 = vpack.c.b16 %v1763, %v1762
        %v1784 = vpack.c.b16 %v1765, %v1764
        %v1785 = vpack.c.b16 %v1767, %v1766
        %v1786 = vpack.c.b16 %v1769, %v1768
        %v1787 = vpack.c.b16 %v1771, %v1770
        %v1820 = vunpack.c.l.b16 %v1688
        %v1821 = vunpack.c.l.b16 %v1689
        %v1822 = vunpack.c.l.b16 %v1690
        %v1823 = vunpack.c.l.b16 %v1691
        %v1824 = vunpack.c.l.b16 %v1692
        %v1825 = vunpack.c.l.b16 %v1693
        %v1826 = vunpack.c.l.b16 %v1694
        %v1827 = vunpack.c.l.b16 %v1695
        %v1828 = vunpack.c.l.b16 %v1696
        %v1829 = vunpack.c.l.b16 %v1697
        %v1830 = vunpack.c.l.b16 %v1698
        %v1831 = vunpack.c.l.b16 %v1699
        %v1832 = vunpack.c.l.b16 %v1700
        %v1833 = vunpack.c.l.b16 %v1701
        %v1834 = vunpack.c.l.b16 %v1702
        %v1835 = vunpack.c.l.b16 %v1703
        %v1836 = vpack.c.b16 %v1821, %v1820
        %v1837 = vpack.c.b16 %v1823, %v1822
        %v1838 = vpack.c.b16 %v1825, %v1824
        %v1839 = vpack.c.b16 %v1827, %v1826
        %v1840 = vpack.c.b16 %v1829, %v1828
        %v1841 = vpack.c.b16 %v1831, %v1830
        %v1842 = vpack.c.b16 %v1833, %v1832
        %v1843 = vpack.c.b16 %v1835, %v1834
        %1852 = vmatpush.bf16.msra.mxu0 %v1843
        %1853 = vmatpush.bf16.msra.mxu0 %v1842
        %1854 = vmatpush.bf16.msra.mxu0 %v1841
        %1855 = vmatpush.bf16.msra.mxu0 %v1840
        %1856 = vmatpush.bf16.msra.mxu0 %v1839
        %1857 = vmatpush.bf16.msra.mxu0 %v1838
        %1858 = vmatpush.bf16.msra.mxu0 %v1837
        %1859 = vmatpush.bf16.msra.mxu0 %v1836
        %1860 = vmatmul.bf16.gmra.mxu0 %v1772
        %v1861 = vpop.f32.mrf.mxu0
        %v1862 = vadd.f32 %v1706, %v1861
        %v1863 = vpop.f32.mrf.mxu0
        %v1864 = vadd.f32 %v1706, %v1863
        %1865 = vmatmul.bf16.gmra.mxu0 %v1773
        %v1866 = vpop.f32.mrf.mxu0
        %v1867 = vadd.f32 %v1706, %v1866
        %v1868 = vpop.f32.mrf.mxu0
        %v1869 = vadd.f32 %v1706, %v1868
        %1870 = vmatmul.bf16.gmra.mxu0 %v1774
        %v1871 = vpop.f32.mrf.mxu0
        %v1872 = vadd.f32 %v1706, %v1871
        %v1873 = vpop.f32.mrf.mxu0
        %v1874 = vadd.f32 %v1706, %v1873
        %1875 = vmatmul.bf16.gmra.mxu0 %v1775
        %v1876 = vpop.f32.mrf.mxu0
        %v1877 = vadd.f32 %v1706, %v1876
        %v1878 = vpop.f32.mrf.mxu0
        %v1879 = vadd.f32 %v1706, %v1878
        %1880 = vmatmul.bf16.gmra.mxu0 %v1776
        %v1881 = vpop.f32.mrf.mxu0
        %v1882 = vadd.f32 %v1706, %v1881
        %v1883 = vpop.f32.mrf.mxu0
        %v1884 = vadd.f32 %v1706, %v1883
        %1885 = vmatmul.bf16.gmra.mxu0 %v1777
        %v1886 = vpop.f32.mrf.mxu0
        %v1887 = vadd.f32 %v1706, %v1886
        %v1888 = vpop.f32.mrf.mxu0
        %v1889 = vadd.f32 %v1706, %v1888
        %1890 = vmatmul.bf16.gmra.mxu0 %v1778
        %v1891 = vpop.f32.mrf.mxu0
        %v1892 = vadd.f32 %v1706, %v1891
        %v1893 = vpop.f32.mrf.mxu0
        %v1894 = vadd.f32 %v1706, %v1893
        %1895 = vmatmul.bf16.gmra.mxu0 %v1779
        %v1896 = vpop.f32.mrf.mxu0
        %v1897 = vadd.f32 %v1706, %v1896
        %v1898 = vpop.f32.mrf.mxu0
        %v1899 = vadd.f32 %v1706, %v1898
        %1900 = vmatmul.bf16.gmra.mxu0 %v1780
        %v1901 = vpop.f32.mrf.mxu0
        %v1902 = vadd.f32 %v1706, %v1901
        %v1903 = vpop.f32.mrf.mxu0
        %v1904 = vadd.f32 %v1706, %v1903
        %1905 = vmatmul.bf16.gmra.mxu0 %v1781
        %v1906 = vpop.f32.mrf.mxu0
        %v1907 = vadd.f32 %v1706, %v1906
        %v1908 = vpop.f32.mrf.mxu0
        %v1909 = vadd.f32 %v1706, %v1908
        %1910 = vmatmul.bf16.gmra.mxu0 %v1782
        %v1911 = vpop.f32.mrf.mxu0
        %v1912 = vadd.f32 %v1706, %v1911
        %v1913 = vpop.f32.mrf.mxu0
        %v1914 = vadd.f32 %v1706, %v1913
        %1915 = vmatmul.bf16.gmra.mxu0 %v1783
        %v1916 = vpop.f32.mrf.mxu0
        %v1917 = vadd.f32 %v1706, %v1916
        %v1918 = vpop.f32.mrf.mxu0
        %v1919 = vadd.f32 %v1706, %v1918
        %1920 = vmatmul.bf16.gmra.mxu0 %v1784
        %v1921 = vpop.f32.mrf.mxu0
        %v1922 = vadd.f32 %v1706, %v1921
        %v1923 = vpop.f32.mrf.mxu0
        %v1924 = vadd.f32 %v1706, %v1923
        %1925 = vmatmul.bf16.gmra.mxu0 %v1785
        %v1926 = vpop.f32.mrf.mxu0
        %v1927 = vadd.f32 %v1706, %v1926
        %v1928 = vpop.f32.mrf.mxu0
        %v1929 = vadd.f32 %v1706, %v1928
        %1930 = vmatmul.bf16.gmra.mxu0 %v1786
        %v1931 = vpop.f32.mrf.mxu0
        %v1932 = vadd.f32 %v1706, %v1931
        %v1933 = vpop.f32.mrf.mxu0
        %v1934 = vadd.f32 %v1706, %v1933
        %1935 = vmatmul.bf16.gmra.mxu0 %v1787
        %v1936 = vpop.f32.mrf.mxu0
        %v1937 = vadd.f32 %v1706, %v1936
        %v1938 = vpop.f32.mrf.mxu0
        %v1939 = vadd.f32 %v1706, %v1938
        %1940 = vdwg.mxu0
        %v1941 = vmax.f32 %v1862, 0.0
        %v1942 = vmax.f32 %v1864, 0.0
        %v1943 = vmax.f32 %v1867, 0.0
        %v1944 = vmax.f32 %v1869, 0.0
        %v1945 = vmax.f32 %v1872, 0.0
        %v1946 = vmax.f32 %v1874, 0.0
        %v1947 = vmax.f32 %v1877, 0.0
        %v1948 = vmax.f32 %v1879, 0.0
        %v1949 = vmax.f32 %v1882, 0.0
        %v1950 = vmax.f32 %v1884, 0.0
        %v1951 = vmax.f32 %v1887, 0.0
        %v1952 = vmax.f32 %v1889, 0.0
        %v1953 = vmax.f32 %v1892, 0.0
        %v1954 = vmax.f32 %v1894, 0.0
        %v1955 = vmax.f32 %v1897, 0.0
        %v1956 = vmax.f32 %v1899, 0.0
        %v1957 = vmax.f32 %v1902, 0.0
        %v1958 = vmax.f32 %v1904, 0.0
        %v1959 = vmax.f32 %v1907, 0.0
        %v1960 = vmax.f32 %v1909, 0.0
        %v1961 = vmax.f32 %v1912, 0.0
        %v1962 = vmax.f32 %v1914, 0.0
        %v1963 = vmax.f32 %v1917, 0.0
        %v1964 = vmax.f32 %v1919, 0.0
        %v1965 = vmax.f32 %v1922, 0.0
        %v1966 = vmax.f32 %v1924, 0.0
        %v1967 = vmax.f32 %v1927, 0.0
        %v1968 = vmax.f32 %v1929, 0.0
        %v1969 = vmax.f32 %v1932, 0.0
        %v1970 = vmax.f32 %v1934, 0.0
        %v1971 = vmax.f32 %v1937, 0.0
        %v1972 = vmax.f32 %v1939, 0.0
        %v1973 = vadd.f32 %v1305, %v1941
        %v1974 = vadd.f32 %v1417, %v1942
        %v1975 = vadd.f32 %v1307, %v1943
        %v1976 = vadd.f32 %v1419, %v1944
        %v1977 = vadd.f32 %v1309, %v1945
        %v1978 = vadd.f32 %v1421, %v1946
        %v1979 = vadd.f32 %v1311, %v1947
        %v1980 = vadd.f32 %v1423, %v1948
        %v1981 = vadd.f32 %v1313, %v1949
        %v1982 = vadd.f32 %v1425, %v1950
        %v1983 = vadd.f32 %v1315, %v1951
        %v1984 = vadd.f32 %v1427, %v1952
        %v1985 = vadd.f32 %v1317, %v1953
        %v1986 = vadd.f32 %v1429, %v1954
        %v1987 = vadd.f32 %v1319, %v1955
        %v1988 = vadd.f32 %v1431, %v1956
        %v1989 = vadd.f32 %v1529, %v1957
        %v1990 = vadd.f32 %v1641, %v1958
        %v1991 = vadd.f32 %v1531, %v1959
        %v1992 = vadd.f32 %v1643, %v1960
        %v1993 = vadd.f32 %v1533, %v1961
        %v1994 = vadd.f32 %v1645, %v1962
        %v1995 = vadd.f32 %v1535, %v1963
        %v1996 = vadd.f32 %v1647, %v1964
        %v1997 = vadd.f32 %v1537, %v1965
        %v1998 = vadd.f32 %v1649, %v1966
        %v1999 = vadd.f32 %v1539, %v1967
        %v2000 = vadd.f32 %v1651, %v1968
        %v2001 = vadd.f32 %v1541, %v1969
        %v2002 = vadd.f32 %v1653, %v1970
        %v2003 = vadd.f32 %v1543, %v1971
        %v2004 = vadd.f32 %v1655, %v1972
        %2005 = vst [vmem:[%s447] sm:$0xff] %v1973
        %2006 = vst [vmem:[%s447 + $0x8] sm:$0xff] %v1974
        %2007 = vst [vmem:[%s447 + $0x10] sm:$0xff] %v1975
        %2008 = vst [vmem:[%s447 + $0x18] sm:$0xff] %v1976
        %2009 = vst [vmem:[%s447 + $0x20] sm:$0xff] %v1977
        %2010 = vst [vmem:[%s447 + $0x28] sm:$0xff] %v1978
        %2011 = vst [vmem:[%s447 + $0x30] sm:$0xff] %v1979
        %2012 = vst [vmem:[%s447 + $0x38] sm:$0xff] %v1980
        %2013 = vst [vmem:[%s447 + $0x40] sm:$0xff] %v1981
        %2014 = vst [vmem:[%s447 + $0x48] sm:$0xff] %v1982
        %2015 = vst [vmem:[%s447 + $0x50] sm:$0xff] %v1983
        %2016 = vst [vmem:[%s447 + $0x58] sm:$0xff] %v1984
        %2017 = vst [vmem:[%s447 + $0x60] sm:$0xff] %v1985
        %2018 = vst [vmem:[%s447 + $0x68] sm:$0xff] %v1986
        %2019 = vst [vmem:[%s447 + $0x70] sm:$0xff] %v1987
        %2020 = vst [vmem:[%s447 + $0x78] sm:$0xff] %v1988
        %2021 = vst [vmem:[%s447 + $0x80] sm:$0xff] %v1989
        %2022 = vst [vmem:[%s447 + $0x88] sm:$0xff] %v1990
        %2023 = vst [vmem:[%s447 + $0x90] sm:$0xff] %v1991
        %2024 = vst [vmem:[%s447 + $0x98] sm:$0xff] %v1992
        %2025 = vst [vmem:[%s447 + $0xa0] sm:$0xff] %v1993
        %2026 = vst [vmem:[%s447 + $0xa8] sm:$0xff] %v1994
        %2027 = vst [vmem:[%s447 + $0xb0] sm:$0xff] %v1995
        %2028 = vst [vmem:[%s447 + $0xb8] sm:$0xff] %v1996
        %2029 = vst [vmem:[%s447 + $0xc0] sm:$0xff] %v1997
        %2030 = vst [vmem:[%s447 + $0xc8] sm:$0xff] %v1998
        %2031 = vst [vmem:[%s447 + $0xd0] sm:$0xff] %v1999
        %2032 = vst [vmem:[%s447 + $0xd8] sm:$0xff] %v2000
        %2033 = vst [vmem:[%s447 + $0xe0] sm:$0xff] %v2001
        %2034 = vst [vmem:[%s447 + $0xe8] sm:$0xff] %v2002
        %2035 = vst [vmem:[%s447 + $0xf0] sm:$0xff] %v2003
        %2036 = vst [vmem:[%s447 + $0xf8] sm:$0xff] %v2004
        %s2037 = sand.u32 %s246, 1
        %s2038 = scalar_lea.sflag [#allocation4], %s2037
        %s2039 = sand.u32 %s246, 1
        %s2040 = smul.addr %s2039, 256
        %s2041 = scalar_lea.vmem [#allocation9], %s2040
        // Predicated region
        $region69: #{tpu_custom_call.1} parent=51 // pred_check
          %p2042 = pneg %p256
        $region70: #{tpu_custom_call.1} parent=51 // pred_check_branch
          %2044 = sbr.rel (%p2042) target = $region72
        $region71: #{tpu_custom_call.1} parent=51 // pred_region
          %2046 = vsyncadd %s2038, 0
          %s2047 = smul.addr %s30, 32
          %s2048 = sadd.s32 %s31, %s2047
          %s2049 = smul.addr %s2048, 8
          %s2050 = scalar_lea.hbm %s8, %s2049
          %s2051 = sshll.u32 %s2041, 4
          %s2052 = int_to_ptr.vmem [resolvable:$true] %s2051
          %s2053 = sshll.u32 %s2050, 4
          %s2054 = int_to_ptr.hbm [resolvable:$true] %s2053
          %2059 = dma.vmem_to_hbm [thread:$0]  %s2052, 4096, %s2054, %s2038, 128, 128, 8
        $region72: #{tpu_custom_call.1} parent=51 // pred_fallthru
          _
      $region52: #{tpu_custom_call.1} parent=5 // pred_fallthru
        _
      %p2060 = scmp.le.s32.totalorder 2, %s21
      // Predicated region
      $region73: #{tpu_custom_call.1} parent=5 // pred_check
        %p2061 = pneg %p2060
      $region74: #{tpu_custom_call.1} parent=5 // pred_check_branch
        %2063 = sbr.rel (%p2061) target = $region76
      $region75: #{tpu_custom_call.1} parent=5 // pred_region
        %s2064 = ssub.s32 %s21, 2
        // Predicated region
        $region77: #{tpu_custom_call.1} parent=75 // pred_check
          %p2065 = pneg %p262
        $region78: #{tpu_custom_call.1} parent=75 // pred_check_branch
          %2067 = sbr.rel (%p2065) target = $region80
        $region79: #{tpu_custom_call.1} parent=75 // pred_region
          %s2068 = sand.u32 %s247, 1
          %s2069 = scalar_lea.sflag [#allocation4], %s2068
          %s2070 = sand.u32 %s247, 1
          %s2071 = smul.addr %s2070, 256
          %s2072 = scalar_lea.vmem [#allocation9], %s2071
          %2074 = dma.done %s2069, 4096
        $region80: #{tpu_custom_call.1} parent=75 // pred_fallthru
          _
      $region76: #{tpu_custom_call.1} parent=5 // pred_fallthru
        _
    $region6: #{tpu_custom_call.1} parent=1 // loop_footer
      %s25 = sadd.s32 1, %s21
    $region7: #{tpu_custom_call.1} parent=1 // loop_footer_branch
      %20 = sbr.rel target = $region3
    $region8: #{tpu_custom_call.1} parent=1 // loop_exit
      _
    %2075 = vsyncpa [#allocation3], 1
    %s2076 = scalar_lea.sflag [#allocation3], 1
    %2077 = vsyncpa %s2076, 1
    %2078 = vsyncpa [#allocation6], 1
    %2079 = vsyncpa [#allocation4], 1
    %s2080 = scalar_lea.sflag [#allocation4], 1
    %2081 = vsyncpa %s2080, 1

</llo_original>
